<compile_context>
chip_gen: v5e
topology: v5e:2x2
jax: 0.10.0
libtpu: 0.0.40
codegen_flags: <defaults>
</compile_context>

<pallas_src>
import functools
import math

import jax
import jax.numpy as jnp
from jax import lax
from jax.experimental import pallas as pl
from jax.experimental.pallas import tpu as pltpu


def _sdpa_kernel(log_t,
                 sigma_ref,                     # scalar-prefetch (SMEM), shape (1,)
                 qc_ref, ka_ref, kb_ref, vr_ref, vi_ref, dwm_ref,
                 oc_ref, ar_ref, ai_ref):
    qc = qc_ref[...]                            # (TB, TQ, 2*Dk) = [q_r | q_i]
    ka = ka_ref[...]                            # (TB, Lk, 2*Dk) = [k_r | k_i]
    kb = kb_ref[...]                            # (TB, Lk, 2*Dk) = [-k_i | k_r]

    nt = (((2,), (2,)), ((0,), (0,)))           # batched NT matmuls
    attn_r = lax.dot_general(qc, ka, nt, preferred_element_type=jnp.float32)
    attn_i = lax.dot_general(qc, kb, nt, preferred_element_type=jnp.float32)

    # g = exp(dwm / sigma^2) / T  ==  exp(dwm / sigma^2 - log T)   (T > 0)
    sigma = sigma_ref[0]
    inv_s2 = 1.0 / (sigma * sigma)
    g = jnp.exp(dwm_ref[...].astype(jnp.float32) * inv_s2 - log_t)

    attn_r = jnp.abs(attn_r * g)
    attn_i = jnp.abs(attn_i * g)

    def _softmax(x):
        m = jnp.max(x, axis=-1, keepdims=True)
        e = jnp.exp(x - m)
        s = jnp.sum(e, axis=-1, keepdims=True)
        # approx=False: the attention weights are part of the returned API.
        return e * pl.reciprocal(s, approx=False)

    attn_r = _softmax(attn_r)
    attn_i = _softmax(attn_i)
    # dropout_r / dropout_i: identity in eval mode.

    vr = vr_ref[...]                            # (TB, Lk, Dv)
    vi = vi_ref[...]
    pv = (((2,), (1,)), ((0,), (0,)))
    out_r = lax.dot_general(attn_r.astype(vr.dtype), vr, pv,
                            preferred_element_type=jnp.float32)
    out_i = lax.dot_general(attn_i.astype(vi.dtype), vi, pv,
                            preferred_element_type=jnp.float32)

    # Single lane-denser store of [out_r | out_i]; split in the wrapper.
    oc_ref[...] = jnp.concatenate([out_r, out_i], axis=-1).astype(oc_ref.dtype)
    ar_ref[...] = attn_r.astype(ar_ref.dtype)
    ai_ref[...] = attn_i.astype(ai_ref.dtype)


def _vmem_caps():
    """(scoped_vmem_cap, tile_selection_budget) in bytes, chip-aware."""
    try:
        phys = int(pltpu.get_tpu_info().vmem_capacity_bytes)
    except Exception:
        phys = 64 << 20                         # conservative default (v7x-sized)
    scoped_cap = (phys * 25) // 32              # 64 MiB -> 50 MiB, 128 MiB -> 100 MiB
    budget = scoped_cap - (8 << 20)             # headroom for Mosaic scratch/spill
    return scoped_cap, budget


def _footprint_bytes(tb, tq, lk, dk, dv, itemsize, kv_buf):
    """Estimated VMEM per grid step incl. pipeline buffering + f32 temporaries."""
    q_b    = 2 * tb * tq * (2 * dk) * itemsize              # qc, double-buffered
    k_b    = kv_buf * 2 * tb * lk * (2 * dk) * itemsize     # k_a + k_b
    v_b    = kv_buf * 2 * tb * lk * dv * itemsize           # v_r + v_i
    dwm_b  = 2 * tb * tq * lk * itemsize
    oc_b   = 2 * tb * tq * (2 * dv) * itemsize
    attn_b = 4 * tb * tq * lk * itemsize                    # ar + ai outputs
    tmp_b  = (6 * tb * tq * lk + 4 * tb * tq * dv + 4 * tb * tq * dk) * 4
    return q_b + k_b + v_b + dwm_b + oc_b + attn_b + tmp_b


def _select_tiles(bh, lq, lk, dk, dv, itemsize, budget, kv_buf):
    """Jointly pick (TB, TQ) to fill the chip-aware VMEM budget."""
    lq8 = -(-lq // 8) * 8
    tq_cands = []
    if lq8 <= 512:
        tq_cands.append(lq8)
    for t in (512, 256, 128, 64, 32):
        if t < lq8:
            tq_cands.append(t)
    tb_cands = [d for d in (32, 16, 8, 4, 2, 1) if bh % d == 0]
    best = None
    for tq in tq_cands:
        for tb in tb_cands:
            if bh >= 2 and tb > bh // 2:
                continue                        # keep >= 2 head-groups for megacore
            if _footprint_bytes(tb, tq, lk, dk, dv, itemsize, kv_buf) <= budget:
                score = tb * tq
                if best is None or score > best[0]:
                    best = (score, tb, tq)
    if best is None:
        return 1, min(tq_cands)
    return best[1], best[2]


def scaled_dot_product_attention(q_r, q_i, k_r, k_i, v_r, v_i, dwm, sigma,
                                 temperature, attn_dtype=None):
    """q/k: [B,H,L,Dk], v: [B,H,Lk,Dv], dwm: [B,H,Lq,Lk], sigma: [1] parameter.

    Returns (out_r, out_i, attn_r, attn_i) matching the PyTorch module in eval
    mode.  `attn_dtype` (optional) stores the returned attention weights in a
    narrower dtype (e.g. bfloat16) to halve the dominant HBM write stream.
    """
    if temperature <= 0:
        raise ValueError("temperature must be positive")

    B, H, Lq, Dk = q_r.shape
    Lk = k_r.shape[2]
    Dv = v_r.shape[3]
    BH = B * H
    dt = q_r.dtype
    itemsize = jnp.dtype(dt).itemsize
    attn_dtype = dt if attn_dtype is None else jnp.dtype(attn_dtype)

    def fold(x):
        return x.reshape((BH,) + x.shape[2:])

    # One-time HBM packing of the complex operands: no per-step in-kernel lane
    # concatenates / negations, and doubled Q/K lane density when Dk < 64.
    qc = jnp.concatenate([fold(q_r), fold(q_i)], axis=-1)       # (BH, Lq, 2Dk)
    ka = jnp.concatenate([fold(k_r), fold(k_i)], axis=-1)       # (BH, Lk, 2Dk)
    kb = jnp.concatenate([-fold(k_i), fold(k_r)], axis=-1)      # (BH, Lk, 2Dk)
    vr, vi = fold(v_r), fold(v_i)
    dw = fold(dwm)

    scoped_cap, budget = _vmem_caps()
    kernel = functools.partial(_sdpa_kernel, float(math.log(temperature)))

    def _run(kv_single_buffer):
        kv_buf = 1 if kv_single_buffer else 2
        TB, TQ = _select_tiles(BH, Lq, Lk, Dk, Dv, itemsize, budget, kv_buf)
        Lq_pad = -(-Lq // TQ) * TQ

        qc_p, dw_p = qc, dw
        if Lq_pad != Lq:
            pad = ((0, 0), (0, Lq_pad - Lq), (0, 0))
            qc_p = jnp.pad(qc, pad)
            dw_p = jnp.pad(dw, pad)

        grid = (BH // TB, Lq_pad // TQ)

        kv_kwargs = {}
        if kv_single_buffer:
            # K/V blocks never change along the inner t axis: a single buffer
            # reclaims VMEM (only re-fetched when the head group changes).
            kv_kwargs = dict(pipeline_mode=pl.Buffered(1))

        # index_maps receive the scalar-prefetch ref (sigma) as a trailing arg.
        q_spec   = pl.BlockSpec((TB, TQ, 2 * Dk), lambda b, t, s: (b, t, 0))
        k_spec   = pl.BlockSpec((TB, Lk, 2 * Dk), lambda b, t, s: (b, 0, 0),
                                **kv_kwargs)
        v_spec   = pl.BlockSpec((TB, Lk, Dv), lambda b, t, s: (b, 0, 0),
                                **kv_kwargs)
        dwm_spec = pl.BlockSpec((TB, TQ, Lk), lambda b, t, s: (b, t, 0))
        o_spec   = pl.BlockSpec((TB, TQ, 2 * Dv), lambda b, t, s: (b, t, 0))
        a_spec   = pl.BlockSpec((TB, TQ, Lk), lambda b, t, s: (b, t, 0))

        est = _footprint_bytes(TB, TQ, Lk, Dk, Dv, itemsize, kv_buf)
        vmem_limit = int(min(max(est + (8 << 20), 32 << 20), scoped_cap))

        out_c, a_r, a_i = pl.pallas_call(
            kernel,
            out_shape=(jax.ShapeDtypeStruct((BH, Lq_pad, 2 * Dv), dt),
                       jax.ShapeDtypeStruct((BH, Lq_pad, Lk), attn_dtype),
                       jax.ShapeDtypeStruct((BH, Lq_pad, Lk), attn_dtype)),
            grid_spec=pltpu.PrefetchScalarGridSpec(
                num_scalar_prefetch=1,
                grid=grid,
                in_specs=[q_spec, k_spec, k_spec, v_spec, v_spec, dwm_spec],
                out_specs=[o_spec, a_spec, a_spec],
            ),
            compiler_params=pltpu.CompilerParams(
                dimension_semantics=("parallel", "parallel"),
                vmem_limit_bytes=vmem_limit),
        )(sigma, qc_p, ka, kb, vr, vi, dw_p)

        if Lq_pad != Lq:
            out_c = out_c[:, :Lq, :]
            a_r = a_r[:, :Lq, :]
            a_i = a_i[:, :Lq, :]
        return out_c, a_r, a_i

    try:
        out_c, a_r, a_i = _run(True)
    except Exception:
        # pl.Buffered(1) not supported on this jax/Mosaic version: fall back to
        # default double-buffered K/V (tiles re-picked with the 2x footprint).
        out_c, a_r, a_i = _run(False)

    out_r = out_c[..., :Dv].reshape(B, H, Lq, Dv)
    out_i = out_c[..., Dv:].reshape(B, H, Lq, Dv)
    return (out_r, out_i,
            a_r.reshape(B, H, Lq, Lk),
            a_i.reshape(B, H, Lq, Lk))


def _reference(q_r, q_i, k_r, k_i, v_r, v_i, dwm, sigma, temperature):
    kt_r = jnp.swapaxes(k_r, 2, 3)
    kt_i = jnp.swapaxes(k_i, 2, 3)
    attn_r = jnp.matmul(q_r / temperature, kt_r) + jnp.matmul(q_i / temperature, kt_i)
    attn_i = jnp.matmul(q_i / temperature, kt_r) - jnp.matmul(q_r / temperature, kt_i)
    g = jnp.exp(dwm / sigma[0] ** 2)
    attn_r = jnp.abs(attn_r * g)
    attn_i = jnp.abs(attn_i * g)
    attn_r = jax.nn.softmax(attn_r, axis=-1)
    attn_i = jax.nn.softmax(attn_i, axis=-1)
    return jnp.matmul(attn_r, v_r), jnp.matmul(attn_i, v_i), attn_r, attn_i


def _check_case(key, B, H, Lq, Lk, Dk, Dv):
    temperature = float(Dk) ** 0.5
    ks = jax.random.split(key, 7)
    q_r = jax.random.normal(ks[0], (B, H, Lq, Dk), jnp.float32)
    q_i = jax.random.normal(ks[1], (B, H, Lq, Dk), jnp.float32)
    k_r = jax.random.normal(ks[2], (B, H, Lk, Dk), jnp.float32)
    k_i = jax.random.normal(ks[3], (B, H, Lk, Dk), jnp.float32)
    v_r = jax.random.normal(ks[4], (B, H, Lk, Dv), jnp.float32)
    v_i = jax.random.normal(ks[5], (B, H, Lk, Dv), jnp.float32)
    dwm = jax.random.normal(ks[6], (B, H, Lq, Lk), jnp.float32) * 0.1
    sigma = jnp.ones((1,), jnp.float32)         # nn.Parameter(torch.ones(1))

    out = scaled_dot_product_attention(q_r, q_i, k_r, k_i, v_r, v_i, dwm,
                                       sigma, temperature)
    out = jax.block_until_ready(out)
    ref = _reference(q_r, q_i, k_r, k_i, v_r, v_i, dwm, sigma, temperature)
    for got, want in zip(out, ref):
        assert got.shape == want.shape, f"shape {got.shape} vs {want.shape}"
        assert jnp.allclose(got, want, atol=1e-4, rtol=1e-4), \
            f"mismatch: max err {jnp.max(jnp.abs(got - want))}"


if __name__ == "__main__":
    key = jax.random.PRNGKey(0)
    k1, k2 = jax.random.split(key)
    # Small canonical case.
    _check_case(k1, B=2, H=2, Lq=8, Lk=8, Dk=32, Dv=32)
    # Awkward dims: exercises Lq padding (44 -> 48) and non-128 lane widths.
    _check_case(k2, B=1, H=3, Lq=44, Lk=40, Dk=16, Dv=24)
    print("KERNEL_OK")
</pallas_src>

<mosaic_0001>
module attributes {stable_mosaic.version = 11 : i64} {
  func.func @_sdpa_kernel(%arg0: i32, %arg1: i32, %arg2: memref<1xf32, #tpu.memory_space<smem>>, %arg3: memref<2x8x64xf32, #tpu.memory_space<vmem>>, %arg4: memref<2x8x64xf32, #tpu.memory_space<vmem>>, %arg5: memref<2x8x64xf32, #tpu.memory_space<vmem>>, %arg6: memref<2x8x32xf32, #tpu.memory_space<vmem>>, %arg7: memref<2x8x32xf32, #tpu.memory_space<vmem>>, %arg8: memref<2x8x8xf32, #tpu.memory_space<vmem>>, %arg9: memref<2x8x64xf32, #tpu.memory_space<vmem>>, %arg10: memref<2x8x8xf32, #tpu.memory_space<vmem>>, %arg11: memref<2x8x8xf32, #tpu.memory_space<vmem>>) attributes {dimension_semantics = [#tpu.dimension_semantics<parallel>, #tpu.dimension_semantics<parallel>], iteration_bounds = array<i64: 2, 1>, scalar_prefetch = 1 : i64, scratch_operands = 0 : i64, tpu.core_type = #tpu.core_type<tc>, window_params = [{transform_indices = @transform_0, window_bounds = array<i64: 2, 8, 64>}, {pipeline_mode = #tpu.pipeline_mode<synchronous>, transform_indices = @transform_1, window_bounds = array<i64: 2, 8, 64>}, {pipeline_mode = #tpu.pipeline_mode<synchronous>, transform_indices = @transform_2, window_bounds = array<i64: 2, 8, 64>}, {pipeline_mode = #tpu.pipeline_mode<synchronous>, transform_indices = @transform_3, window_bounds = array<i64: 2, 8, 32>}, {pipeline_mode = #tpu.pipeline_mode<synchronous>, transform_indices = @transform_4, window_bounds = array<i64: 2, 8, 32>}, {transform_indices = @transform_5, window_bounds = array<i64: 2, 8, 8>}, {transform_indices = @transform_6, window_bounds = array<i64: 2, 8, 64>}, {transform_indices = @transform_7, window_bounds = array<i64: 2, 8, 8>}, {transform_indices = @transform_8, window_bounds = array<i64: 2, 8, 8>}]} {
    %c0 = arith.constant 0 : index
    %c0_0 = arith.constant 0 : index
    %c0_1 = arith.constant 0 : index
    %0 = vector.load %arg3[%c0, %c0_0, %c0_1] : memref<2x8x64xf32, #tpu.memory_space<vmem>>, vector<2x8x64xf32>
    %c0_2 = arith.constant 0 : index
    %c0_3 = arith.constant 0 : index
    %c0_4 = arith.constant 0 : index
    %1 = vector.load %arg4[%c0_2, %c0_3, %c0_4] : memref<2x8x64xf32, #tpu.memory_space<vmem>>, vector<2x8x64xf32>
    %c0_5 = arith.constant 0 : index
    %c0_6 = arith.constant 0 : index
    %c0_7 = arith.constant 0 : index
    %2 = vector.load %arg5[%c0_5, %c0_6, %c0_7] : memref<2x8x64xf32, #tpu.memory_space<vmem>>, vector<2x8x64xf32>
    %cst = arith.constant dense<0.000000e+00> : vector<2x8x8xf32>
    %3 = tpu.matmul %0, %1, %cst {dimension_numbers = #tpu.dot_dimension_numbers<[2], [2], [1], [1], [0, 0, 0, 1, 1, 1], [0], [0]>} : vector<2x8x64xf32>, vector<2x8x64xf32>, vector<2x8x8xf32> -> vector<2x8x8xf32>
    %cst_8 = arith.constant dense<0.000000e+00> : vector<2x8x8xf32>
    %4 = tpu.matmul %0, %2, %cst_8 {dimension_numbers = #tpu.dot_dimension_numbers<[2], [2], [1], [1], [0, 0, 0, 1, 1, 1], [0], [0]>} : vector<2x8x64xf32>, vector<2x8x64xf32>, vector<2x8x8xf32> -> vector<2x8x8xf32>
    %c0_9 = arith.constant 0 : index
    %5 = memref.load %arg2[%c0_9] : memref<1xf32, #tpu.memory_space<smem>>
    %6 = arith.mulf %5, %5 : f32
    %cst_10 = arith.constant 1.000000e+00 : f32
    %7 = arith.divf %cst_10, %6 : f32
    %c0_11 = arith.constant 0 : index
    %c0_12 = arith.constant 0 : index
    %c0_13 = arith.constant 0 : index
    %8 = vector.load %arg8[%c0_11, %c0_12, %c0_13] : memref<2x8x8xf32, #tpu.memory_space<vmem>>, vector<2x8x8xf32>
    %9 = vector.broadcast %7 : f32 to vector<2x8x8xf32>
    %10 = arith.mulf %8, %9 : vector<2x8x8xf32>
    %cst_14 = arith.constant 1.73286796 : f32
    %11 = vector.broadcast %cst_14 : f32 to vector<2x8x8xf32>
    %12 = arith.subf %10, %11 : vector<2x8x8xf32>
    %13 = math.exp %12 : vector<2x8x8xf32>
    %14 = arith.mulf %3, %13 : vector<2x8x8xf32>
    %15 = math.absf %14 : vector<2x8x8xf32>
    %16 = arith.mulf %4, %13 : vector<2x8x8xf32>
    %17 = math.absf %16 : vector<2x8x8xf32>
    %cst_15 = arith.constant dense<0xFF800000> : vector<2x8xf32>
    %18 = vector.multi_reduction <maximumf>, %15, %cst_15 [2] : vector<2x8x8xf32> to vector<2x8xf32>
    %19 = vector.shape_cast %18 : vector<2x8xf32> to vector<2x8x1xf32>
    %20 = vector.broadcast %19 : vector<2x8x1xf32> to vector<2x8x8xf32>
    %21 = arith.subf %15, %20 : vector<2x8x8xf32>
    %22 = math.exp %21 : vector<2x8x8xf32>
    %cst_16 = arith.constant dense<0.000000e+00> : vector<2x8xf32>
    %23 = vector.multi_reduction <add>, %22, %cst_16 [2] : vector<2x8x8xf32> to vector<2x8xf32>
    %24 = vector.shape_cast %23 : vector<2x8xf32> to vector<2x8x1xf32>
    %25 = tpu.reciprocal %24 : vector<2x8x1xf32> -> vector<2x8x1xf32>
    %26 = vector.broadcast %25 : vector<2x8x1xf32> to vector<2x8x8xf32>
    %27 = arith.mulf %22, %26 : vector<2x8x8xf32>
    %cst_17 = arith.constant dense<0xFF800000> : vector<2x8xf32>
    %28 = vector.multi_reduction <maximumf>, %17, %cst_17 [2] : vector<2x8x8xf32> to vector<2x8xf32>
    %29 = vector.shape_cast %28 : vector<2x8xf32> to vector<2x8x1xf32>
    %30 = vector.broadcast %29 : vector<2x8x1xf32> to vector<2x8x8xf32>
    %31 = arith.subf %17, %30 : vector<2x8x8xf32>
    %32 = math.exp %31 : vector<2x8x8xf32>
    %cst_18 = arith.constant dense<0.000000e+00> : vector<2x8xf32>
    %33 = vector.multi_reduction <add>, %32, %cst_18 [2] : vector<2x8x8xf32> to vector<2x8xf32>
    %34 = vector.shape_cast %33 : vector<2x8xf32> to vector<2x8x1xf32>
    %35 = tpu.reciprocal %34 : vector<2x8x1xf32> -> vector<2x8x1xf32>
    %36 = vector.broadcast %35 : vector<2x8x1xf32> to vector<2x8x8xf32>
    %37 = arith.mulf %32, %36 : vector<2x8x8xf32>
    %c0_19 = arith.constant 0 : index
    %c0_20 = arith.constant 0 : index
    %c0_21 = arith.constant 0 : index
    %38 = vector.load %arg6[%c0_19, %c0_20, %c0_21] : memref<2x8x32xf32, #tpu.memory_space<vmem>>, vector<2x8x32xf32>
    %c0_22 = arith.constant 0 : index
    %c0_23 = arith.constant 0 : index
    %c0_24 = arith.constant 0 : index
    %39 = vector.load %arg7[%c0_22, %c0_23, %c0_24] : memref<2x8x32xf32, #tpu.memory_space<vmem>>, vector<2x8x32xf32>
    %cst_25 = arith.constant dense<0.000000e+00> : vector<2x8x32xf32>
    %40 = tpu.matmul %27, %38, %cst_25 {dimension_numbers = #tpu.dot_dimension_numbers<[2], [1], [1], [2], [0, 0, 0, 1, 1, 2], [0], [0]>} : vector<2x8x8xf32>, vector<2x8x32xf32>, vector<2x8x32xf32> -> vector<2x8x32xf32>
    %cst_26 = arith.constant dense<0.000000e+00> : vector<2x8x32xf32>
    %41 = tpu.matmul %37, %39, %cst_26 {dimension_numbers = #tpu.dot_dimension_numbers<[2], [1], [1], [2], [0, 0, 0, 1, 1, 2], [0], [0]>} : vector<2x8x8xf32>, vector<2x8x32xf32>, vector<2x8x32xf32> -> vector<2x8x32xf32>
    %42 = tpu.concatenate %40, %41 in 2 : vector<2x8x32xf32>, vector<2x8x32xf32> -> vector<2x8x64xf32>
    %c0_27 = arith.constant 0 : index
    %c0_28 = arith.constant 0 : index
    %c0_29 = arith.constant 0 : index
    %43 = vector.load %arg9[%c0_27, %c0_28, %c0_29] : memref<2x8x64xf32, #tpu.memory_space<vmem>>, vector<2x8x64xf32>
    tpu.vector_store %arg9[%c0_27, %c0_28, %c0_29], %42 {strides = array<i32>} : memref<2x8x64xf32, #tpu.memory_space<vmem>>, vector<2x8x64xf32>,
    %c0_30 = arith.constant 0 : index
    %c0_31 = arith.constant 0 : index
    %c0_32 = arith.constant 0 : index
    %44 = vector.load %arg10[%c0_30, %c0_31, %c0_32] : memref<2x8x8xf32, #tpu.memory_space<vmem>>, vector<2x8x8xf32>
    tpu.vector_store %arg10[%c0_30, %c0_31, %c0_32], %27 {strides = array<i32>} : memref<2x8x8xf32, #tpu.memory_space<vmem>>, vector<2x8x8xf32>,
    %c0_33 = arith.constant 0 : index
    %c0_34 = arith.constant 0 : index
    %c0_35 = arith.constant 0 : index
    %45 = vector.load %arg11[%c0_33, %c0_34, %c0_35] : memref<2x8x8xf32, #tpu.memory_space<vmem>>, vector<2x8x8xf32>
    tpu.vector_store %arg11[%c0_33, %c0_34, %c0_35], %37 {strides = array<i32>} : memref<2x8x8xf32, #tpu.memory_space<vmem>>, vector<2x8x8xf32>,
    return
  }
  func.func @transform_0(%arg0: i32, %arg1: i32, %arg2: memref<1xf32, #tpu.memory_space<smem>>) -> (i32, i32, i32) {
    %c0_i32 = arith.constant 0 : i32
    %c0_i32_0 = arith.constant 0 : i32
    return %arg0, %arg1, %c0_i32 : i32, i32, i32
  }
  func.func @transform_1(%arg0: i32, %arg1: i32, %arg2: memref<1xf32, #tpu.memory_space<smem>>) -> (i32, i32, i32) {
    %c0_i32 = arith.constant 0 : i32
    %c0_i32_0 = arith.constant 0 : i32
    %c0_i32_1 = arith.constant 0 : i32
    return %arg0, %c0_i32, %c0_i32_0 : i32, i32, i32
  }
  func.func @transform_2(%arg0: i32, %arg1: i32, %arg2: memref<1xf32, #tpu.memory_space<smem>>) -> (i32, i32, i32) {
    %c0_i32 = arith.constant 0 : i32
    %c0_i32_0 = arith.constant 0 : i32
    %c0_i32_1 = arith.constant 0 : i32
    return %arg0, %c0_i32, %c0_i32_0 : i32, i32, i32
  }
  func.func @transform_3(%arg0: i32, %arg1: i32, %arg2: memref<1xf32, #tpu.memory_space<smem>>) -> (i32, i32, i32) {
    %c0_i32 = arith.constant 0 : i32
    %c0_i32_0 = arith.constant 0 : i32
    %c0_i32_1 = arith.constant 0 : i32
    return %arg0, %c0_i32, %c0_i32_0 : i32, i32, i32
  }
  func.func @transform_4(%arg0: i32, %arg1: i32, %arg2: memref<1xf32, #tpu.memory_space<smem>>) -> (i32, i32, i32) {
    %c0_i32 = arith.constant 0 : i32
    %c0_i32_0 = arith.constant 0 : i32
    %c0_i32_1 = arith.constant 0 : i32
    return %arg0, %c0_i32, %c0_i32_0 : i32, i32, i32
  }
  func.func @transform_5(%arg0: i32, %arg1: i32, %arg2: memref<1xf32, #tpu.memory_space<smem>>) -> (i32, i32, i32) {
    %c0_i32 = arith.constant 0 : i32
    %c0_i32_0 = arith.constant 0 : i32
    return %arg0, %arg1, %c0_i32 : i32, i32, i32
  }
  func.func @transform_6(%arg0: i32, %arg1: i32, %arg2: memref<1xf32, #tpu.memory_space<smem>>) -> (i32, i32, i32) {
    %c0_i32 = arith.constant 0 : i32
    %c0_i32_0 = arith.constant 0 : i32
    return %arg0, %arg1, %c0_i32 : i32, i32, i32
  }
  func.func @transform_7(%arg0: i32, %arg1: i32, %arg2: memref<1xf32, #tpu.memory_space<smem>>) -> (i32, i32, i32) {
    %c0_i32 = arith.constant 0 : i32
    %c0_i32_0 = arith.constant 0 : i32
    return %arg0, %arg1, %c0_i32 : i32, i32, i32
  }
  func.func @transform_8(%arg0: i32, %arg1: i32, %arg2: memref<1xf32, #tpu.memory_space<smem>>) -> (i32, i32, i32) {
    %c0_i32 = arith.constant 0 : i32
    %c0_i32_0 = arith.constant 0 : i32
    return %arg0, %arg1, %c0_i32 : i32, i32, i32
  }
}

module attributes {stable_mosaic.version = 11 : i64} {
  func.func @_sdpa_kernel(%arg0: i32, %arg1: i32, %arg2: memref<1xf32, #tpu.memory_space<smem>>, %arg3: memref<2x8x64xf32, #tpu.memory_space<vmem>>, %arg4: memref<2x8x64xf32, #tpu.memory_space<vmem>>, %arg5: memref<2x8x64xf32, #tpu.memory_space<vmem>>, %arg6: memref<2x8x32xf32, #tpu.memory_space<vmem>>, %arg7: memref<2x8x32xf32, #tpu.memory_space<vmem>>, %arg8: memref<2x8x8xf32, #tpu.memory_space<vmem>>, %arg9: memref<2x8x64xf32, #tpu.memory_space<vmem>>, %arg10: memref<2x8x8xf32, #tpu.memory_space<vmem>>, %arg11: memref<2x8x8xf32, #tpu.memory_space<vmem>>) attributes {dimension_semantics = [#tpu.dimension_semantics<parallel>, #tpu.dimension_semantics<parallel>], iteration_bounds = array<i64: 2, 1>, scalar_prefetch = 1 : i64, scratch_operands = 0 : i64, tpu.core_type = #tpu.core_type<tc>, window_params = [{transform_indices = @transform_0, window_bounds = array<i64: 2, 8, 64>}, {transform_indices = @transform_1, window_bounds = array<i64: 2, 8, 64>}, {transform_indices = @transform_2, window_bounds = array<i64: 2, 8, 64>}, {transform_indices = @transform_3, window_bounds = array<i64: 2, 8, 32>}, {transform_indices = @transform_4, window_bounds = array<i64: 2, 8, 32>}, {transform_indices = @transform_5, window_bounds = array<i64: 2, 8, 8>}, {transform_indices = @transform_6, window_bounds = array<i64: 2, 8, 64>}, {transform_indices = @transform_7, window_bounds = array<i64: 2, 8, 8>}, {transform_indices = @transform_8, window_bounds = array<i64: 2, 8, 8>}]} {
    %c0 = arith.constant 0 : index
    %c0_0 = arith.constant 0 : index
    %c0_1 = arith.constant 0 : index
    %0 = vector.load %arg3[%c0, %c0_0, %c0_1] : memref<2x8x64xf32, #tpu.memory_space<vmem>>, vector<2x8x64xf32>
    %c0_2 = arith.constant 0 : index
    %c0_3 = arith.constant 0 : index
    %c0_4 = arith.constant 0 : index
    %1 = vector.load %arg4[%c0_2, %c0_3, %c0_4] : memref<2x8x64xf32, #tpu.memory_space<vmem>>, vector<2x8x64xf32>
    %c0_5 = arith.constant 0 : index
    %c0_6 = arith.constant 0 : index
    %c0_7 = arith.constant 0 : index
    %2 = vector.load %arg5[%c0_5, %c0_6, %c0_7] : memref<2x8x64xf32, #tpu.memory_space<vmem>>, vector<2x8x64xf32>
    %cst = arith.constant dense<0.000000e+00> : vector<2x8x8xf32>
    %3 = tpu.matmul %0, %1, %cst {dimension_numbers = #tpu.dot_dimension_numbers<[2], [2], [1], [1], [0, 0, 0, 1, 1, 1], [0], [0]>} : vector<2x8x64xf32>, vector<2x8x64xf32>, vector<2x8x8xf32> -> vector<2x8x8xf32>
    %cst_8 = arith.constant dense<0.000000e+00> : vector<2x8x8xf32>
    %4 = tpu.matmul %0, %2, %cst_8 {dimension_numbers = #tpu.dot_dimension_numbers<[2], [2], [1], [1], [0, 0, 0, 1, 1, 1], [0], [0]>} : vector<2x8x64xf32>, vector<2x8x64xf32>, vector<2x8x8xf32> -> vector<2x8x8xf32>
    %c0_9 = arith.constant 0 : index
    %5 = memref.load %arg2[%c0_9] : memref<1xf32, #tpu.memory_space<smem>>
    %6 = arith.mulf %5, %5 : f32
    %cst_10 = arith.constant 1.000000e+00 : f32
    %7 = arith.divf %cst_10, %6 : f32
    %c0_11 = arith.constant 0 : index
    %c0_12 = arith.constant 0 : index
    %c0_13 = arith.constant 0 : index
    %8 = vector.load %arg8[%c0_11, %c0_12, %c0_13] : memref<2x8x8xf32, #tpu.memory_space<vmem>>, vector<2x8x8xf32>
    %9 = vector.broadcast %7 : f32 to vector<2x8x8xf32>
    %10 = arith.mulf %8, %9 : vector<2x8x8xf32>
    %cst_14 = arith.constant 1.73286796 : f32
    %11 = vector.broadcast %cst_14 : f32 to vector<2x8x8xf32>
    %12 = arith.subf %10, %11 : vector<2x8x8xf32>
    %13 = math.exp %12 : vector<2x8x8xf32>
    %14 = arith.mulf %3, %13 : vector<2x8x8xf32>
    %15 = math.absf %14 : vector<2x8x8xf32>
    %16 = arith.mulf %4, %13 : vector<2x8x8xf32>
    %17 = math.absf %16 : vector<2x8x8xf32>
    %cst_15 = arith.constant dense<0xFF800000> : vector<2x8xf32>
    %18 = vector.multi_reduction <maximumf>, %15, %cst_15 [2] : vector<2x8x8xf32> to vector<2x8xf32>
    %19 = vector.shape_cast %18 : vector<2x8xf32> to vector<2x8x1xf32>
    %20 = vector.broadcast %19 : vector<2x8x1xf32> to vector<2x8x8xf32>
    %21 = arith.subf %15, %20 : vector<2x8x8xf32>
    %22 = math.exp %21 : vector<2x8x8xf32>
    %cst_16 = arith.constant dense<0.000000e+00> : vector<2x8xf32>
    %23 = vector.multi_reduction <add>, %22, %cst_16 [2] : vector<2x8x8xf32> to vector<2x8xf32>
    %24 = vector.shape_cast %23 : vector<2x8xf32> to vector<2x8x1xf32>
    %25 = tpu.reciprocal %24 : vector<2x8x1xf32> -> vector<2x8x1xf32>
    %26 = vector.broadcast %25 : vector<2x8x1xf32> to vector<2x8x8xf32>
    %27 = arith.mulf %22, %26 : vector<2x8x8xf32>
    %cst_17 = arith.constant dense<0xFF800000> : vector<2x8xf32>
    %28 = vector.multi_reduction <maximumf>, %17, %cst_17 [2] : vector<2x8x8xf32> to vector<2x8xf32>
    %29 = vector.shape_cast %28 : vector<2x8xf32> to vector<2x8x1xf32>
    %30 = vector.broadcast %29 : vector<2x8x1xf32> to vector<2x8x8xf32>
    %31 = arith.subf %17, %30 : vector<2x8x8xf32>
    %32 = math.exp %31 : vector<2x8x8xf32>
    %cst_18 = arith.constant dense<0.000000e+00> : vector<2x8xf32>
    %33 = vector.multi_reduction <add>, %32, %cst_18 [2] : vector<2x8x8xf32> to vector<2x8xf32>
    %34 = vector.shape_cast %33 : vector<2x8xf32> to vector<2x8x1xf32>
    %35 = tpu.reciprocal %34 : vector<2x8x1xf32> -> vector<2x8x1xf32>
    %36 = vector.broadcast %35 : vector<2x8x1xf32> to vector<2x8x8xf32>
    %37 = arith.mulf %32, %36 : vector<2x8x8xf32>
    %c0_19 = arith.constant 0 : index
    %c0_20 = arith.constant 0 : index
    %c0_21 = arith.constant 0 : index
    %38 = vector.load %arg6[%c0_19, %c0_20, %c0_21] : memref<2x8x32xf32, #tpu.memory_space<vmem>>, vector<2x8x32xf32>
    %c0_22 = arith.constant 0 : index
    %c0_23 = arith.constant 0 : index
    %c0_24 = arith.constant 0 : index
    %39 = vector.load %arg7[%c0_22, %c0_23, %c0_24] : memref<2x8x32xf32, #tpu.memory_space<vmem>>, vector<2x8x32xf32>
    %cst_25 = arith.constant dense<0.000000e+00> : vector<2x8x32xf32>
    %40 = tpu.matmul %27, %38, %cst_25 {dimension_numbers = #tpu.dot_dimension_numbers<[2], [1], [1], [2], [0, 0, 0, 1, 1, 2], [0], [0]>} : vector<2x8x8xf32>, vector<2x8x32xf32>, vector<2x8x32xf32> -> vector<2x8x32xf32>
    %cst_26 = arith.constant dense<0.000000e+00> : vector<2x8x32xf32>
    %41 = tpu.matmul %37, %39, %cst_26 {dimension_numbers = #tpu.dot_dimension_numbers<[2], [1], [1], [2], [0, 0, 0, 1, 1, 2], [0], [0]>} : vector<2x8x8xf32>, vector<2x8x32xf32>, vector<2x8x32xf32> -> vector<2x8x32xf32>
    %42 = tpu.concatenate %40, %41 in 2 : vector<2x8x32xf32>, vector<2x8x32xf32> -> vector<2x8x64xf32>
    %c0_27 = arith.constant 0 : index
    %c0_28 = arith.constant 0 : index
    %c0_29 = arith.constant 0 : index
    %43 = vector.load %arg9[%c0_27, %c0_28, %c0_29] : memref<2x8x64xf32, #tpu.memory_space<vmem>>, vector<2x8x64xf32>
    tpu.vector_store %arg9[%c0_27, %c0_28, %c0_29], %42 {strides = array<i32>} : memref<2x8x64xf32, #tpu.memory_space<vmem>>, vector<2x8x64xf32>,
    %c0_30 = arith.constant 0 : index
    %c0_31 = arith.constant 0 : index
    %c0_32 = arith.constant 0 : index
    %44 = vector.load %arg10[%c0_30, %c0_31, %c0_32] : memref<2x8x8xf32, #tpu.memory_space<vmem>>, vector<2x8x8xf32>
    tpu.vector_store %arg10[%c0_30, %c0_31, %c0_32], %27 {strides = array<i32>} : memref<2x8x8xf32, #tpu.memory_space<vmem>>, vector<2x8x8xf32>,
    %c0_33 = arith.constant 0 : index
    %c0_34 = arith.constant 0 : index
    %c0_35 = arith.constant 0 : index
    %45 = vector.load %arg11[%c0_33, %c0_34, %c0_35] : memref<2x8x8xf32, #tpu.memory_space<vmem>>, vector<2x8x8xf32>
    tpu.vector_store %arg11[%c0_33, %c0_34, %c0_35], %37 {strides = array<i32>} : memref<2x8x8xf32, #tpu.memory_space<vmem>>, vector<2x8x8xf32>,
    return
  }
  func.func @transform_0(%arg0: i32, %arg1: i32, %arg2: memref<1xf32, #tpu.memory_space<smem>>) -> (i32, i32, i32) {
    %c0_i32 = arith.constant 0 : i32
    %c0_i32_0 = arith.constant 0 : i32
    return %arg0, %arg1, %c0_i32 : i32, i32, i32
  }
  func.func @transform_1(%arg0: i32, %arg1: i32, %arg2: memref<1xf32, #tpu.memory_space<smem>>) -> (i32, i32, i32) {
    %c0_i32 = arith.constant 0 : i32
    %c0_i32_0 = arith.constant 0 : i32
    %c0_i32_1 = arith.constant 0 : i32
    return %arg0, %c0_i32, %c0_i32_0 : i32, i32, i32
  }
  func.func @transform_2(%arg0: i32, %arg1: i32, %arg2: memref<1xf32, #tpu.memory_space<smem>>) -> (i32, i32, i32) {
    %c0_i32 = arith.constant 0 : i32
    %c0_i32_0 = arith.constant 0 : i32
    %c0_i32_1 = arith.constant 0 : i32
    return %arg0, %c0_i32, %c0_i32_0 : i32, i32, i32
  }
  func.func @transform_3(%arg0: i32, %arg1: i32, %arg2: memref<1xf32, #tpu.memory_space<smem>>) -> (i32, i32, i32) {
    %c0_i32 = arith.constant 0 : i32
    %c0_i32_0 = arith.constant 0 : i32
    %c0_i32_1 = arith.constant 0 : i32
    return %arg0, %c0_i32, %c0_i32_0 : i32, i32, i32
  }
  func.func @transform_4(%arg0: i32, %arg1: i32, %arg2: memref<1xf32, #tpu.memory_space<smem>>) -> (i32, i32, i32) {
    %c0_i32 = arith.constant 0 : i32
    %c0_i32_0 = arith.constant 0 : i32
    %c0_i32_1 = arith.constant 0 : i32
    return %arg0, %c0_i32, %c0_i32_0 : i32, i32, i32
  }
  func.func @transform_5(%arg0: i32, %arg1: i32, %arg2: memref<1xf32, #tpu.memory_space<smem>>) -> (i32, i32, i32) {
    %c0_i32 = arith.constant 0 : i32
    %c0_i32_0 = arith.constant 0 : i32
    return %arg0, %arg1, %c0_i32 : i32, i32, i32
  }
  func.func @transform_6(%arg0: i32, %arg1: i32, %arg2: memref<1xf32, #tpu.memory_space<smem>>) -> (i32, i32, i32) {
    %c0_i32 = arith.constant 0 : i32
    %c0_i32_0 = arith.constant 0 : i32
    return %arg0, %arg1, %c0_i32 : i32, i32, i32
  }
  func.func @transform_7(%arg0: i32, %arg1: i32, %arg2: memref<1xf32, #tpu.memory_space<smem>>) -> (i32, i32, i32) {
    %c0_i32 = arith.constant 0 : i32
    %c0_i32_0 = arith.constant 0 : i32
    return %arg0, %arg1, %c0_i32 : i32, i32, i32
  }
  func.func @transform_8(%arg0: i32, %arg1: i32, %arg2: memref<1xf32, #tpu.memory_space<smem>>) -> (i32, i32, i32) {
    %c0_i32 = arith.constant 0 : i32
    %c0_i32_0 = arith.constant 0 : i32
    return %arg0, %arg1, %c0_i32 : i32, i32, i32
  }
}

</mosaic_0001>

<llo_original>
// kernel: tpu_custom_call.1
$region0: #{tpu_custom_call.1}
  #allocation0 [shape = 'u32[]', space=smem, size = 0x4, offset = 0x4, fixed_abs, tag = 'smem constant byte address 0x4 - core index']
  #allocation1 [shape = 'u32[72,128]{1,0:T(1,128)}', space=vmem, size = 0x9000, scoped, tag = 'internal scratch']
  #allocation2 [shape = 's32[1]{0}', space=sflag, size = 0x4, scoped, tag = 'scoped memory for tpu_custom_call.1']
  #allocation3 [shape = 'f32[1]{0:T(128)S(6)}', space=smem, size = 0x200, scoped, tag = 'prefetched SMEM operand 0']
  %s0 = inlined_call_operand.<no memory space> [shape: f32[1], index: 0, kind: input, shape index: {}]
  %s1 = inlined_call_operand.hbm [shape: f32[4,8,64], index: 1, kind: input, shape index: {}]
  %s2 = inlined_call_operand.hbm [shape: f32[4,8,64], index: 2, kind: input, shape index: {}]
  %s3 = inlined_call_operand.hbm [shape: f32[4,8,64], index: 3, kind: input, shape index: {}]
  %s4 = inlined_call_operand.hbm [shape: f32[4,8,32], index: 4, kind: input, shape index: {}]
  %s5 = inlined_call_operand.hbm [shape: f32[4,8,32], index: 5, kind: input, shape index: {}]
  %s6 = inlined_call_operand.hbm [shape: f32[4,8,8], index: 6, kind: input, shape index: {}]
  %s7 = inlined_call_operand.hbm [shape: f32[4,8,64], index: 7, kind: output, shape index: {0}]
  %s8 = inlined_call_operand.hbm [shape: f32[4,8,8], index: 8, kind: output, shape index: {1}]
  %s9 = inlined_call_operand.hbm [shape: f32[4,8,8], index: 9, kind: output, shape index: {2}]
  %10 = xla_tuple %s7, %s8, %s9
  %s11 = sld [smem:[#allocation0]]
  $region97: #{tpu_custom_call.1} parent=0
    _
  %s13 = ssub.s32 1, %s11
  %s14 = scalar_select 0, %s13, %s11
  %15 = sst [smem:[#allocation3]] %s0
  $region1: #{tpu_custom_call.1} parent=0
    #allocation4 [shape = 'u8[16384]{0}', space=vmem, size = 0x4000, scoped, tag = 'input window, operand 1']
    #allocation5 [shape = 's32[2]{0}', space=sflag, size = 0x8, scoped, tag = 'scoped memory for tpu_custom_call.1']
    #allocation6 [shape = 's32[2]{0}', space=sflag, size = 0x8, scoped, tag = 'scoped memory for tpu_custom_call.1']
    #allocation7 [shape = 'u8[8192]{0}', space=vmem, size = 0x2000, scoped, tag = 'input window, operand 2, single buffered']
    #allocation8 [shape = 's32[1]{0}', space=sflag, size = 0x4, scoped, tag = 'scoped memory for tpu_custom_call.1']
    #allocation9 [shape = 'u8[8192]{0}', space=vmem, size = 0x2000, scoped, tag = 'input window, operand 3, single buffered']
    #allocation10 [shape = 'u8[8192]{0}', space=vmem, size = 0x2000, scoped, tag = 'input window, operand 4, single buffered']
    #allocation11 [shape = 's32[1]{0}', space=sflag, size = 0x4, scoped, tag = 'scoped memory for tpu_custom_call.1']
    #allocation12 [shape = 'u8[8192]{0}', space=vmem, size = 0x2000, scoped, tag = 'input window, operand 5, single buffered']
    #allocation13 [shape = 'u8[16384]{0}', space=vmem, size = 0x4000, scoped, tag = 'input window, operand 6']
    #allocation14 [shape = 's32[2]{0}', space=sflag, size = 0x8, scoped, tag = 'scoped memory for tpu_custom_call.1']
    #allocation15 [shape = 'u8[16384]{0}', space=vmem, size = 0x4000, scoped, tag = 'output window, operand 0']
    #allocation16 [shape = 'u8[16384]{0}', space=vmem, size = 0x4000, scoped, tag = 'output window, operand 1']
    #allocation17 [shape = 's32[2]{0}', space=sflag, size = 0x8, scoped, tag = 'scoped memory for tpu_custom_call.1']
    #allocation18 [shape = 'u8[16384]{0}', space=vmem, size = 0x4000, scoped, tag = 'output window, operand 2']
    %16 = vsyncpa [#allocation5], 0
    %s17 = scalar_lea.sflag [#allocation5], 1
    %18 = vsyncpa %s17, 0
    %19 = vsyncpa [#allocation8], 0
    %20 = vsyncpa [#allocation11], 0
    %21 = vsyncpa [#allocation14], 0
    %s22 = scalar_lea.sflag [#allocation14], 1
    %23 = vsyncpa %s22, 0
    %24 = vsyncpa [#allocation6], 0
    %s25 = scalar_lea.sflag [#allocation6], 1
    %26 = vsyncpa %s25, 0
    %27 = vsyncpa [#allocation17], 0
    %s28 = scalar_lea.sflag [#allocation17], 1
    %29 = vsyncpa %s28, 0
    loop: start=0, step=1, limit=4
    $region2: #{tpu_custom_call.1} parent=1 // loop_pre_header
      _
    $region3: #{tpu_custom_call.1} parent=1 // loop_header
      %s31 = sphi 0, %s35
      %p32 = scmp.ge.s32.totalorder %s31, 4
      %s38 = sphi 0, %s50
      %s39 = sphi 0, %s46
      %s40 = sphi 0, %s38
      %s41 = sphi 0, %s39
      %s42 = sphi 0, %s40
      %s43 = sphi 0, %s41
      %s55 = sphi 0, %s57
      %s58 = sphi 0, %s55
      %s59 = sphi 0, %s58
      %s75 = sphi 0, %s59
      %s81 = sphi 0, %s83
      %s84 = sphi 0, %s81
      %s85 = sphi 0, %s84
      %s101 = sphi 0, %s85
      %s107 = sphi 0, %s109
      %s110 = sphi 0, %s107
      %s111 = sphi 0, %s110
      %s127 = sphi 0, %s111
      %s133 = sphi 0, %s135
      %s136 = sphi 0, %s133
      %s137 = sphi 0, %s136
      %s153 = sphi 0, %s137
      %s159 = sphi 0, %s161
      %s162 = sphi 0, %s159
      %s163 = sphi 0, %s162
      %s179 = sphi 0, %s163
      %s187 = sphi 0, %s189
      %s190 = sphi 0, %s187
      %s191 = sphi 0, %s190
      %s207 = sphi 0, %s191
      %s215 = sphi 0, %s217
      %s218 = sphi 0, %s215
      %s219 = sphi 0, %s218
      %s235 = sphi 0, %s219
      %s243 = sphi 0, %s245
      %s246 = sphi 0, %s243
      %s247 = sphi 0, %s246
      %s263 = sphi 0, %s247
      %s271 = sphi 0, %s273
      %s274 = sphi 0, %s271
      %s275 = sphi 0, %s274
      %s291 = sphi 0, %s275
    $region4: #{tpu_custom_call.1} parent=1 // loop_header_branch
      %34 = sbr.rel (%p32) target = $region8
    $region5: #{tpu_custom_call.1} parent=1 // loop_body
      %s36 = ssub.s32 %s31, 1
      %s37 = ssub.s32 %s31, 2
      %s44 = sadd.s32 1, %s39
      %p45 = scmp.ge.s32.totalorder %s44, 1
      %s46 = scalar_select %p45, 0, %s44
      %s47 = sadd.s32 1, %s38
      %s48 = scalar_select %p45, %s47, %s38
      %p49 = scmp.ge.s32.totalorder %s48, 2
      %s50 = scalar_select %p49, 0, %s48
      %s51 = ssub.s32 %s38, %s50
      %s52 = ssub.s32 %s39, %s46
      %s53 = sor.u32 %s51, %s52
      %p54 = scmp.eq.s32.totalorder %s53, 0
      %s56 = sadd.s32 %s55, 1
      %s57 = scalar_select %p54, %s55, %s56
      %p60 = pneg %p54
      %p61 = scmp.eq.s32.totalorder %s31, 1
      %p62 = por %p60, %p61
      %p63 = scmp.ne.s32.totalorder %s55, %s58
      %p64 = scmp.eq.s32.totalorder %s31, 0
      %p65 = por %p63, %p64
      %p66 = scmp.ne.s32.totalorder %s55, %s58
      %p67 = scmp.eq.s32.totalorder %s36, 1
      %p68 = por %p66, %p67
      %p69 = scmp.ne.s32.totalorder %s58, %s59
      %p70 = scmp.eq.s32.totalorder %s36, 0
      %p71 = por %p69, %p70
      %p72 = scmp.ne.s32.totalorder %s58, %s59
      %p73 = scmp.eq.s32.totalorder %s37, 1
      %p74 = por %p72, %p73
      %p76 = scmp.ne.s32.totalorder %s59, %s75
      %p77 = scmp.eq.s32.totalorder %s37, 0
      %p78 = por %p76, %p77
      %s79 = ssub.s32 %s38, %s50
      %p80 = scmp.eq.s32.totalorder %s79, 0
      %s82 = sadd.s32 %s81, 1
      %s83 = scalar_select %p80, %s81, %s82
      %p86 = pneg %p80
      %p87 = scmp.eq.s32.totalorder %s31, 1
      %p88 = por %p86, %p87
      %p89 = scmp.ne.s32.totalorder %s81, %s84
      %p90 = scmp.eq.s32.totalorder %s31, 0
      %p91 = por %p89, %p90
      %p92 = scmp.ne.s32.totalorder %s81, %s84
      %p93 = scmp.eq.s32.totalorder %s36, 1
      %p94 = por %p92, %p93
      %p95 = scmp.ne.s32.totalorder %s84, %s85
      %p96 = scmp.eq.s32.totalorder %s36, 0
      %p97 = por %p95, %p96
      %p98 = scmp.ne.s32.totalorder %s84, %s85
      %p99 = scmp.eq.s32.totalorder %s37, 1
      %p100 = por %p98, %p99
      %p102 = scmp.ne.s32.totalorder %s85, %s101
      %p103 = scmp.eq.s32.totalorder %s37, 0
      %p104 = por %p102, %p103
      %s105 = ssub.s32 %s38, %s50
      %p106 = scmp.eq.s32.totalorder %s105, 0
      %s108 = sadd.s32 %s107, 1
      %s109 = scalar_select %p106, %s107, %s108
      %p112 = pneg %p106
      %p113 = scmp.eq.s32.totalorder %s31, 1
      %p114 = por %p112, %p113
      %p115 = scmp.ne.s32.totalorder %s107, %s110
      %p116 = scmp.eq.s32.totalorder %s31, 0
      %p117 = por %p115, %p116
      %p118 = scmp.ne.s32.totalorder %s107, %s110
      %p119 = scmp.eq.s32.totalorder %s36, 1
      %p120 = por %p118, %p119
      %p121 = scmp.ne.s32.totalorder %s110, %s111
      %p122 = scmp.eq.s32.totalorder %s36, 0
      %p123 = por %p121, %p122
      %p124 = scmp.ne.s32.totalorder %s110, %s111
      %p125 = scmp.eq.s32.totalorder %s37, 1
      %p126 = por %p124, %p125
      %p128 = scmp.ne.s32.totalorder %s111, %s127
      %p129 = scmp.eq.s32.totalorder %s37, 0
      %p130 = por %p128, %p129
      %s131 = ssub.s32 %s38, %s50
      %p132 = scmp.eq.s32.totalorder %s131, 0
      %s134 = sadd.s32 %s133, 1
      %s135 = scalar_select %p132, %s133, %s134
      %p138 = pneg %p132
      %p139 = scmp.eq.s32.totalorder %s31, 1
      %p140 = por %p138, %p139
      %p141 = scmp.ne.s32.totalorder %s133, %s136
      %p142 = scmp.eq.s32.totalorder %s31, 0
      %p143 = por %p141, %p142
      %p144 = scmp.ne.s32.totalorder %s133, %s136
      %p145 = scmp.eq.s32.totalorder %s36, 1
      %p146 = por %p144, %p145
      %p147 = scmp.ne.s32.totalorder %s136, %s137
      %p148 = scmp.eq.s32.totalorder %s36, 0
      %p149 = por %p147, %p148
      %p150 = scmp.ne.s32.totalorder %s136, %s137
      %p151 = scmp.eq.s32.totalorder %s37, 1
      %p152 = por %p150, %p151
      %p154 = scmp.ne.s32.totalorder %s137, %s153
      %p155 = scmp.eq.s32.totalorder %s37, 0
      %p156 = por %p154, %p155
      %s157 = ssub.s32 %s38, %s50
      %p158 = scmp.eq.s32.totalorder %s157, 0
      %s160 = sadd.s32 %s159, 1
      %s161 = scalar_select %p158, %s159, %s160
      %p164 = pneg %p158
      %p165 = scmp.eq.s32.totalorder %s31, 1
      %p166 = por %p164, %p165
      %p167 = scmp.ne.s32.totalorder %s159, %s162
      %p168 = scmp.eq.s32.totalorder %s31, 0
      %p169 = por %p167, %p168
      %p170 = scmp.ne.s32.totalorder %s159, %s162
      %p171 = scmp.eq.s32.totalorder %s36, 1
      %p172 = por %p170, %p171
      %p173 = scmp.ne.s32.totalorder %s162, %s163
      %p174 = scmp.eq.s32.totalorder %s36, 0
      %p175 = por %p173, %p174
      %p176 = scmp.ne.s32.totalorder %s162, %s163
      %p177 = scmp.eq.s32.totalorder %s37, 1
      %p178 = por %p176, %p177
      %p180 = scmp.ne.s32.totalorder %s163, %s179
      %p181 = scmp.eq.s32.totalorder %s37, 0
      %p182 = por %p180, %p181
      %s183 = ssub.s32 %s38, %s50
      %s184 = ssub.s32 %s39, %s46
      %s185 = sor.u32 %s183, %s184
      %p186 = scmp.eq.s32.totalorder %s185, 0
      %s188 = sadd.s32 %s187, 1
      %s189 = scalar_select %p186, %s187, %s188
      %p192 = pneg %p186
      %p193 = scmp.eq.s32.totalorder %s31, 1
      %p194 = por %p192, %p193
      %p195 = scmp.ne.s32.totalorder %s187, %s190
      %p196 = scmp.eq.s32.totalorder %s31, 0
      %p197 = por %p195, %p196
      %p198 = scmp.ne.s32.totalorder %s187, %s190
      %p199 = scmp.eq.s32.totalorder %s36, 1
      %p200 = por %p198, %p199
      %p201 = scmp.ne.s32.totalorder %s190, %s191
      %p202 = scmp.eq.s32.totalorder %s36, 0
      %p203 = por %p201, %p202
      %p204 = scmp.ne.s32.totalorder %s190, %s191
      %p205 = scmp.eq.s32.totalorder %s37, 1
      %p206 = por %p204, %p205
      %p208 = scmp.ne.s32.totalorder %s191, %s207
      %p209 = scmp.eq.s32.totalorder %s37, 0
      %p210 = por %p208, %p209
      %s211 = ssub.s32 %s38, %s50
      %s212 = ssub.s32 %s39, %s46
      %s213 = sor.u32 %s211, %s212
      %p214 = scmp.eq.s32.totalorder %s213, 0
      %s216 = sadd.s32 %s215, 1
      %s217 = scalar_select %p214, %s215, %s216
      %p220 = pneg %p214
      %p221 = scmp.eq.s32.totalorder %s31, 1
      %p222 = por %p220, %p221
      %p223 = scmp.ne.s32.totalorder %s215, %s218
      %p224 = scmp.eq.s32.totalorder %s31, 0
      %p225 = por %p223, %p224
      %p226 = scmp.ne.s32.totalorder %s215, %s218
      %p227 = scmp.eq.s32.totalorder %s36, 1
      %p228 = por %p226, %p227
      %p229 = scmp.ne.s32.totalorder %s218, %s219
      %p230 = scmp.eq.s32.totalorder %s36, 0
      %p231 = por %p229, %p230
      %p232 = scmp.ne.s32.totalorder %s218, %s219
      %p233 = scmp.eq.s32.totalorder %s37, 1
      %p234 = por %p232, %p233
      %p236 = scmp.ne.s32.totalorder %s219, %s235
      %p237 = scmp.eq.s32.totalorder %s37, 0
      %p238 = por %p236, %p237
      %s239 = ssub.s32 %s38, %s50
      %s240 = ssub.s32 %s39, %s46
      %s241 = sor.u32 %s239, %s240
      %p242 = scmp.eq.s32.totalorder %s241, 0
      %s244 = sadd.s32 %s243, 1
      %s245 = scalar_select %p242, %s243, %s244
      %p248 = pneg %p242
      %p249 = scmp.eq.s32.totalorder %s31, 1
      %p250 = por %p248, %p249
      %p251 = scmp.ne.s32.totalorder %s243, %s246
      %p252 = scmp.eq.s32.totalorder %s31, 0
      %p253 = por %p251, %p252
      %p254 = scmp.ne.s32.totalorder %s243, %s246
      %p255 = scmp.eq.s32.totalorder %s36, 1
      %p256 = por %p254, %p255
      %p257 = scmp.ne.s32.totalorder %s246, %s247
      %p258 = scmp.eq.s32.totalorder %s36, 0
      %p259 = por %p257, %p258
      %p260 = scmp.ne.s32.totalorder %s246, %s247
      %p261 = scmp.eq.s32.totalorder %s37, 1
      %p262 = por %p260, %p261
      %p264 = scmp.ne.s32.totalorder %s247, %s263
      %p265 = scmp.eq.s32.totalorder %s37, 0
      %p266 = por %p264, %p265
      %s267 = ssub.s32 %s38, %s50
      %s268 = ssub.s32 %s39, %s46
      %s269 = sor.u32 %s267, %s268
      %p270 = scmp.eq.s32.totalorder %s269, 0
      %s272 = sadd.s32 %s271, 1
      %s273 = scalar_select %p270, %s271, %s272
      %p276 = pneg %p270
      %p277 = scmp.eq.s32.totalorder %s31, 1
      %p278 = por %p276, %p277
      %p279 = scmp.ne.s32.totalorder %s271, %s274
      %p280 = scmp.eq.s32.totalorder %s31, 0
      %p281 = por %p279, %p280
      %p282 = scmp.ne.s32.totalorder %s271, %s274
      %p283 = scmp.eq.s32.totalorder %s36, 1
      %p284 = por %p282, %p283
      %p285 = scmp.ne.s32.totalorder %s274, %s275
      %p286 = scmp.eq.s32.totalorder %s36, 0
      %p287 = por %p285, %p286
      %p288 = scmp.ne.s32.totalorder %s274, %s275
      %p289 = scmp.eq.s32.totalorder %s37, 1
      %p290 = por %p288, %p289
      %p292 = scmp.ne.s32.totalorder %s275, %s291
      %p293 = scmp.eq.s32.totalorder %s37, 0
      %p294 = por %p292, %p293
      %p295 = scmp.le.s32.totalorder 1, %s31
      %p296 = scmp.lt.s32.totalorder %s31, 3
      %p297 = pnand %p295, %p296
      %p298 = pneg %p297
      // Predicated region
      $region9: #{tpu_custom_call.1} parent=5 // pred_check
        _
      $region10: #{tpu_custom_call.1} parent=5 // pred_check_branch
        %300 = sbr.rel (%p297) target = $region12
      $region11: #{tpu_custom_call.1} parent=5 // pred_region
        %s301 = ssub.s32 %s31, 1
        // Predicated region
        $region13: #{tpu_custom_call.1} parent=11 // pred_check
          %p302 = pneg %p97
        $region14: #{tpu_custom_call.1} parent=11 // pred_check_branch
          %304 = sbr.rel (%p302) target = $region16
        $region15: #{tpu_custom_call.1} parent=11 // pred_region
          %s305 = smul.u32 2, %s40
          %307 = vsyncadd [#allocation8], 0
          %s308 = smul.addr %s305, 8
          %s309 = scalar_lea.hbm %s2, %s308
          %s310 = sshll.u32 %s309, 4
          %s311 = int_to_ptr.hbm [resolvable:$true] %s310
          %s312 = sshll.u32 [#allocation7], 4
          %s313 = int_to_ptr.vmem [resolvable:$true] %s312
          %318 = dma.hbm_to_vmem [thread:$0]  %s311, 256, %s313, [#allocation8], 128, 128, 8
        $region16: #{tpu_custom_call.1} parent=11 // pred_fallthru
          _
        // Predicated region
        $region17: #{tpu_custom_call.1} parent=11 // pred_check
          %p319 = pneg %p123
        $region18: #{tpu_custom_call.1} parent=11 // pred_check_branch
          %321 = sbr.rel (%p319) target = $region20
        $region19: #{tpu_custom_call.1} parent=11 // pred_region
          %s322 = smul.u32 2, %s40
          %324 = vsyncadd [#allocation8], 0
          %s325 = smul.addr %s322, 8
          %s326 = scalar_lea.hbm %s3, %s325
          %s327 = sshll.u32 %s326, 4
          %s328 = int_to_ptr.hbm [resolvable:$true] %s327
          %s329 = sshll.u32 [#allocation9], 4
          %s330 = int_to_ptr.vmem [resolvable:$true] %s329
          %335 = dma.hbm_to_vmem [thread:$0]  %s328, 256, %s330, [#allocation8], 128, 128, 8
        $region20: #{tpu_custom_call.1} parent=11 // pred_fallthru
          _
        // Predicated region
        $region21: #{tpu_custom_call.1} parent=11 // pred_check
          %p336 = pneg %p149
        $region22: #{tpu_custom_call.1} parent=11 // pred_check_branch
          %338 = sbr.rel (%p336) target = $region24
        $region23: #{tpu_custom_call.1} parent=11 // pred_region
          %s339 = smul.u32 2, %s40
          %341 = vsyncadd [#allocation11], 0
          %s342 = smul.addr %s339, 8
          %s343 = scalar_lea.hbm %s4, %s342
          %s344 = sshll.u32 %s343, 4
          %s345 = int_to_ptr.hbm [resolvable:$true] %s344
          %s346 = sshll.u32 [#allocation10], 4
          %s347 = int_to_ptr.vmem [resolvable:$true] %s346
          %352 = dma.hbm_to_vmem [thread:$0]  %s345, 256, %s347, [#allocation11], 128, 128, 8
        $region24: #{tpu_custom_call.1} parent=11 // pred_fallthru
          _
        // Predicated region
        $region25: #{tpu_custom_call.1} parent=11 // pred_check
          %p353 = pneg %p175
        $region26: #{tpu_custom_call.1} parent=11 // pred_check_branch
          %355 = sbr.rel (%p353) target = $region28
        $region27: #{tpu_custom_call.1} parent=11 // pred_region
          %s356 = smul.u32 2, %s40
          %358 = vsyncadd [#allocation11], 0
          %s359 = smul.addr %s356, 8
          %s360 = scalar_lea.hbm %s5, %s359
          %s361 = sshll.u32 %s360, 4
          %s362 = int_to_ptr.hbm [resolvable:$true] %s361
          %s363 = sshll.u32 [#allocation12], 4
          %s364 = int_to_ptr.vmem [resolvable:$true] %s363
          %369 = dma.hbm_to_vmem [thread:$0]  %s362, 256, %s364, [#allocation11], 128, 128, 8
        $region28: #{tpu_custom_call.1} parent=11 // pred_fallthru
          _
      $region12: #{tpu_custom_call.1} parent=5 // pred_fallthru
        _
      %p370 = scmp.lt.s32.totalorder %s31, 2
      // Predicated region
      $region29: #{tpu_custom_call.1} parent=5 // pred_check
        %p371 = pneg %p370
      $region30: #{tpu_custom_call.1} parent=5 // pred_check_branch
        %373 = sbr.rel (%p371) target = $region32
      $region31: #{tpu_custom_call.1} parent=5 // pred_region
        // Predicated region
        $region33: #{tpu_custom_call.1} parent=31 // pred_check
          %p374 = pneg %p65
        $region34: #{tpu_custom_call.1} parent=31 // pred_check_branch
          %376 = sbr.rel (%p374) target = $region36
        $region35: #{tpu_custom_call.1} parent=31 // pred_region
          %s377 = sand.u32 %s55, 1
          %s378 = scalar_lea.sflag [#allocation5], %s377
          %s379 = sand.u32 %s55, 1
          %s380 = smul.addr %s379, 16
          %s381 = scalar_lea.vmem [#allocation4], %s380
          %s382 = smul.u32 2, %s38
          %384 = vsyncadd %s378, 0
          %s385 = sadd.s32 %s39, %s382
          %s386 = smul.addr %s385, 8
          %s387 = scalar_lea.hbm %s1, %s386
          %s388 = sshll.u32 %s387, 4
          %s389 = int_to_ptr.hbm [resolvable:$true] %s388
          %s390 = sshll.u32 %s381, 4
          %s391 = int_to_ptr.vmem [resolvable:$true] %s390
          %396 = dma.hbm_to_vmem [thread:$0]  %s389, 256, %s391, %s378, 128, 128, 8
        $region36: #{tpu_custom_call.1} parent=31 // pred_fallthru
          _
        // Predicated region
        $region37: #{tpu_custom_call.1} parent=31 // pred_check
          %p397 = pneg %p197
        $region38: #{tpu_custom_call.1} parent=31 // pred_check_branch
          %399 = sbr.rel (%p397) target = $region40
        $region39: #{tpu_custom_call.1} parent=31 // pred_region
          %s400 = sand.u32 %s187, 1
          %s401 = scalar_lea.sflag [#allocation14], %s400
          %s402 = sand.u32 %s187, 1
          %s403 = smul.addr %s402, 16
          %s404 = scalar_lea.vmem [#allocation13], %s403
          %s405 = smul.u32 2, %s38
          %407 = vsyncadd %s401, 0
          %s408 = sadd.s32 %s39, %s405
          %s409 = smul.addr %s408, 8
          %s410 = scalar_lea.hbm %s6, %s409
          %s411 = sshll.u32 %s410, 4
          %s412 = int_to_ptr.hbm [resolvable:$true] %s411
          %s413 = sshll.u32 %s404, 4
          %s414 = int_to_ptr.vmem [resolvable:$true] %s413
          %419 = dma.hbm_to_vmem [thread:$0]  %s412, 256, %s414, %s401, 128, 128, 8
        $region40: #{tpu_custom_call.1} parent=31 // pred_fallthru
          _
      $region32: #{tpu_custom_call.1} parent=5 // pred_fallthru
        _
      %p420 = scmp.le.s32.totalorder 1, %s31
      %p421 = scmp.lt.s32.totalorder %s31, 3
      %p422 = pnand %p420, %p421
      %p423 = pneg %p422
      // Predicated region
      $region41: #{tpu_custom_call.1} parent=5 // pred_check
        _
      $region42: #{tpu_custom_call.1} parent=5 // pred_check_branch
        %425 = sbr.rel (%p422) target = $region44
      $region43: #{tpu_custom_call.1} parent=5 // pred_region
        %s426 = ssub.s32 %s31, 1
        %s427 = sand.u32 %s58, 1
        %s428 = scalar_lea.sflag [#allocation5], %s427
        %s429 = sand.u32 %s58, 1
        %s430 = smul.addr %s429, 16
        %s431 = scalar_lea.vmem [#allocation4], %s430
        // Predicated region
        $region45: #{tpu_custom_call.1} parent=43 // pred_check
          %p432 = pneg %p71
        $region46: #{tpu_custom_call.1} parent=43 // pred_check_branch
          %434 = sbr.rel (%p432) target = $region48
        $region47: #{tpu_custom_call.1} parent=43 // pred_region
          %436 = dma.done %s428, 256
        $region48: #{tpu_custom_call.1} parent=43 // pred_fallthru
          _
        // Predicated region
        $region49: #{tpu_custom_call.1} parent=43 // pred_check
          %p437 = pneg %p97
        $region50: #{tpu_custom_call.1} parent=43 // pred_check_branch
          %439 = sbr.rel (%p437) target = $region52
        $region51: #{tpu_custom_call.1} parent=43 // pred_region
          %441 = dma.done [#allocation8], 256
        $region52: #{tpu_custom_call.1} parent=43 // pred_fallthru
          _
        // Predicated region
        $region53: #{tpu_custom_call.1} parent=43 // pred_check
          %p442 = pneg %p123
        $region54: #{tpu_custom_call.1} parent=43 // pred_check_branch
          %444 = sbr.rel (%p442) target = $region56
        $region55: #{tpu_custom_call.1} parent=43 // pred_region
          %446 = dma.done [#allocation8], 256
        $region56: #{tpu_custom_call.1} parent=43 // pred_fallthru
          _
        // Predicated region
        $region57: #{tpu_custom_call.1} parent=43 // pred_check
          %p447 = pneg %p149
        $region58: #{tpu_custom_call.1} parent=43 // pred_check_branch
          %449 = sbr.rel (%p447) target = $region60
        $region59: #{tpu_custom_call.1} parent=43 // pred_region
          %451 = dma.done [#allocation11], 256
        $region60: #{tpu_custom_call.1} parent=43 // pred_fallthru
          _
        // Predicated region
        $region61: #{tpu_custom_call.1} parent=43 // pred_check
          %p452 = pneg %p175
        $region62: #{tpu_custom_call.1} parent=43 // pred_check_branch
          %454 = sbr.rel (%p452) target = $region64
        $region63: #{tpu_custom_call.1} parent=43 // pred_region
          %456 = dma.done [#allocation11], 256
        $region64: #{tpu_custom_call.1} parent=43 // pred_fallthru
          _
        %s457 = sand.u32 %s190, 1
        %s458 = scalar_lea.sflag [#allocation14], %s457
        %s459 = sand.u32 %s190, 1
        %s460 = smul.addr %s459, 16
        %s461 = scalar_lea.vmem [#allocation13], %s460
        // Predicated region
        $region65: #{tpu_custom_call.1} parent=43 // pred_check
          %p462 = pneg %p203
        $region66: #{tpu_custom_call.1} parent=43 // pred_check_branch
          %464 = sbr.rel (%p462) target = $region68
        $region67: #{tpu_custom_call.1} parent=43 // pred_region
          %466 = dma.done %s458, 256
        $region68: #{tpu_custom_call.1} parent=43 // pred_fallthru
          _
        %s467 = sand.u32 %s58, 1
        %s468 = scalar_lea.sflag [#allocation5], %s467
        %s469 = sand.u32 %s58, 1
        %s470 = smul.addr %s469, 16
        %s471 = scalar_lea.vmem [#allocation4], %s470
        %p472 = pneg %p71
        %p473 = pneg %p68
        %p474 = pneg %p97
        %p475 = pneg %p94
        %p476 = pneg %p123
        %p477 = pneg %p120
        %p478 = pneg %p149
        %p479 = pneg %p146
        %p480 = pneg %p175
        %p481 = pneg %p172
        %s482 = sand.u32 %s190, 1
        %s483 = scalar_lea.sflag [#allocation14], %s482
        %s484 = sand.u32 %s190, 1
        %s485 = smul.addr %s484, 16
        %s486 = scalar_lea.vmem [#allocation13], %s485
        %p487 = pneg %p203
        %p488 = pneg %p200
        %p489 = pneg %p231
        %p490 = pneg %p228
        %s491 = sand.u32 %s218, 1
        %s492 = scalar_lea.sflag [#allocation6], %s491
        %s493 = sand.u32 %s218, 1
        %s494 = smul.addr %s493, 16
        %s495 = scalar_lea.vmem [#allocation15], %s494
        %p496 = pneg %p259
        %p497 = pneg %p256
        %s498 = sand.u32 %s36, 1
        %s499 = scalar_lea.sflag [#allocation17], %s498
        %s500 = sand.u32 %s246, 1
        %s501 = smul.addr %s500, 16
        %s502 = scalar_lea.vmem [#allocation16], %s501
        %p503 = pneg %p287
        %p504 = pneg %p284
        %s505 = sand.u32 %s36, 1
        %s506 = scalar_lea.sflag [#allocation17], %s505
        %s507 = sand.u32 %s274, 1
        %s508 = smul.addr %s507, 16
        %s509 = scalar_lea.vmem [#allocation18], %s508
        %s510 = smul.u32 2, %s40
        %s511 = smul.u32 2, %s40
        %s512 = smul.u32 2, %s40
        %s513 = smul.u32 2, %s40
        %s514 = smul.u32 2, %s40
        %s515 = smul.u32 2, %s40
        %s516 = smul.u32 2, %s40
        %s517 = smul.u32 2, %s40
        %s518 = smul.u32 2, %s40
        %v519 = vld [vmem:[%s431] sm:$0xff]
        %v520 = vld [vmem:[%s431 + $0x8] sm:$0xff]
        %v521 = vld [vmem:[#allocation7] sm:$0xff]
        %v522 = vld [vmem:[#allocation7 + $0x8] sm:$0xff]
        %v523 = vld [vmem:[#allocation9] sm:$0xff]
        %v524 = vld [vmem:[#allocation9 + $0x8] sm:$0xff]
        %vm525 = vcmask 523264
        %v527 = vsel %vm525, %v519, 0
        %v530 = vsel %vm525, %v521, 0
        %532 = vmatpush.xpose.msra.mxu0 0.0
        %533 = vmatpush.xpose.msra.mxu0 0.0
        %534 = vmatpush.xpose.msra.mxu0 0.0
        %535 = vmatpush.xpose.msra.mxu0 0.0
        %536 = vmatpush.xpose.msra.mxu0 0.0
        %537 = vmatpush.xpose.msra.mxu0 0.0
        %538 = vmatpush.xpose.msra.mxu0 0.0
        %539 = vmatpush.xpose.msra.mxu0 0.0
        %540 = vmatpush.xpose.msra.mxu0 0.0
        %541 = vmatpush.xpose.msra.mxu0 0.0
        %542 = vmatpush.xpose.msra.mxu0 0.0
        %543 = vmatpush.xpose.msra.mxu0 0.0
        %544 = vmatpush.xpose.msra.mxu0 0.0
        %545 = vmatpush.xpose.msra.mxu0 0.0
        %546 = vmatpush.xpose.msra.mxu0 0.0
        %547 = vmatpush.xpose.msra.mxu0 %v530
        %548 = vmatmul.f32.gmra.mxu0 %v527
        %v549 = vpop.f32.mrf.mxu0
        %v550 = vadd.f32 0.0, %v549
        %551 = vdwg.mxu0
        %v553 = vsel %vm525, %v520, 0
        %v556 = vsel %vm525, %v522, 0
        %558 = vmatpush.xpose.msra.mxu0 0.0
        %559 = vmatpush.xpose.msra.mxu0 0.0
        %560 = vmatpush.xpose.msra.mxu0 0.0
        %561 = vmatpush.xpose.msra.mxu0 0.0
        %562 = vmatpush.xpose.msra.mxu0 0.0
        %563 = vmatpush.xpose.msra.mxu0 0.0
        %564 = vmatpush.xpose.msra.mxu0 0.0
        %565 = vmatpush.xpose.msra.mxu0 0.0
        %566 = vmatpush.xpose.msra.mxu0 0.0
        %567 = vmatpush.xpose.msra.mxu0 0.0
        %568 = vmatpush.xpose.msra.mxu0 0.0
        %569 = vmatpush.xpose.msra.mxu0 0.0
        %570 = vmatpush.xpose.msra.mxu0 0.0
        %571 = vmatpush.xpose.msra.mxu0 0.0
        %572 = vmatpush.xpose.msra.mxu0 0.0
        %573 = vmatpush.xpose.msra.mxu0 %v556
        %574 = vmatmul.f32.gmra.mxu0 %v553
        %v575 = vpop.f32.mrf.mxu0
        %v576 = vadd.f32 0.0, %v575
        %577 = vdwg.mxu0
        %v579 = vsel %vm525, %v523, 0
        %581 = vmatpush.xpose.msra.mxu0 0.0
        %582 = vmatpush.xpose.msra.mxu0 0.0
        %583 = vmatpush.xpose.msra.mxu0 0.0
        %584 = vmatpush.xpose.msra.mxu0 0.0
        %585 = vmatpush.xpose.msra.mxu0 0.0
        %586 = vmatpush.xpose.msra.mxu0 0.0
        %587 = vmatpush.xpose.msra.mxu0 0.0
        %588 = vmatpush.xpose.msra.mxu0 0.0
        %589 = vmatpush.xpose.msra.mxu0 0.0
        %590 = vmatpush.xpose.msra.mxu0 0.0
        %591 = vmatpush.xpose.msra.mxu0 0.0
        %592 = vmatpush.xpose.msra.mxu0 0.0
        %593 = vmatpush.xpose.msra.mxu0 0.0
        %594 = vmatpush.xpose.msra.mxu0 0.0
        %595 = vmatpush.xpose.msra.mxu0 0.0
        %596 = vmatpush.xpose.msra.mxu0 %v579
        %597 = vmatmul.f32.gmra.mxu0 %v527
        %v598 = vpop.f32.mrf.mxu0
        %v599 = vadd.f32 0.0, %v598
        %600 = vdwg.mxu0
        %v602 = vsel %vm525, %v524, 0
        %604 = vmatpush.xpose.msra.mxu0 0.0
        %605 = vmatpush.xpose.msra.mxu0 0.0
        %606 = vmatpush.xpose.msra.mxu0 0.0
        %607 = vmatpush.xpose.msra.mxu0 0.0
        %608 = vmatpush.xpose.msra.mxu0 0.0
        %609 = vmatpush.xpose.msra.mxu0 0.0
        %610 = vmatpush.xpose.msra.mxu0 0.0
        %611 = vmatpush.xpose.msra.mxu0 0.0
        %612 = vmatpush.xpose.msra.mxu0 0.0
        %613 = vmatpush.xpose.msra.mxu0 0.0
        %614 = vmatpush.xpose.msra.mxu0 0.0
        %615 = vmatpush.xpose.msra.mxu0 0.0
        %616 = vmatpush.xpose.msra.mxu0 0.0
        %617 = vmatpush.xpose.msra.mxu0 0.0
        %618 = vmatpush.xpose.msra.mxu0 0.0
        %619 = vmatpush.xpose.msra.mxu0 %v602
        %620 = vmatmul.f32.gmra.mxu0 %v553
        %v621 = vpop.f32.mrf.mxu0
        %v622 = vadd.f32 0.0, %v621
        %623 = vdwg.mxu0
        %s624 = sld [smem:[#allocation3]]
        %s625 = smul.f32 %s624, %s624
        %v626 = vstv %s625
        %v627 = vrcp.pop %v626
        %v628 = vmul.f32 %v626, %v627
        %v629 = vsub.f32 1.0, %v628
        %v630 = vmul.f32 %v627, %v629
        %v631 = vadd.f32 %v627, %v630
        %vm632 = vweird.f32 %v626
        %vm633 = vweird.f32 %v627
        %vm634 = vmor %vm632, %vm633
        %v635 = vsel %vm634, %v627, %v631
        %v636 = vand.u32 2147483647, %v626
        %vm637 = vcmp.eq.f32.partialorder %v636, 8.507059e+37
        %v638 = vand.u32 %v626, 2147483648
        %v639 = vor.u32 1.1754944e-38, %v638
        %v640 = vsel %vm637, %v639, %v635
        %s641 = vtos %v640
        %v642 = vld [vmem:[%s461] sm:$0xff]
        %v643 = vld [vmem:[%s461 + $0x8] sm:$0xff]
        %v644 = vstv %s641
        %v645 = vmul.f32 %v642, %v644
        %v646 = vmul.f32 %v643, %v644
        %v647 = vsub.f32 %v645, 1.732868
        %v648 = vsub.f32 %v646, 1.732868
        %v649 = vmul.f32 %v647, 1.442695
        %v650 = vpow.pop %v649
        %v651 = vmul.f32 %v648, 1.442695
        %v652 = vpow.pop %v651
        %v653 = vmul.f32 %v550, %v650
        %v654 = vmul.f32 %v576, %v652
        %v655 = vand.u32 2147483647, %v653
        %v656 = vand.u32 2147483647, %v654
        %v657 = vmul.f32 %v599, %v650
        %v658 = vmul.f32 %v622, %v652
        %v659 = vand.u32 2147483647, %v657
        %v660 = vand.u32 2147483647, %v658
        %vm661 = vcmask 64512
        %v662 = vsel %vm661, %v655, -inf
        %663 = vmax.xlane.f32.xlu0 %v662
        %v664 = vpop.xlane.xlu0 %663
        %v665 = vsel %vm661, %v656, -inf
        %666 = vmax.xlane.f32.xlu0 %v665
        %v667 = vpop.xlane.xlu0 %666
        %v668 = vsub.f32 %v655, %v664
        %v669 = vsub.f32 %v656, %v667
        %v670 = vmul.f32 %v668, 1.442695
        %v671 = vpow.pop %v670
        %v672 = vmul.f32 %v669, 1.442695
        %v673 = vpow.pop %v672
        %v674 = vsel %vm661, %v671, 0.0
        %675 = vadd.xlane.f32.xlu0 %v674
        %v676 = vpop.xlane.xlu0 %675
        %v677 = vsel %vm661, %v673, 0.0
        %678 = vadd.xlane.f32.xlu0 %v677
        %v679 = vpop.xlane.xlu0 %678
        %v680 = vrcp.pop %v676
        %v681 = vmul.f32 %v676, %v680
        %v682 = vsub.f32 1.0, %v681
        %v683 = vmul.f32 %v680, %v682
        %v684 = vadd.f32 %v680, %v683
        %vm685 = vweird.f32 %v676
        %vm686 = vweird.f32 %v680
        %vm687 = vmor %vm685, %vm686
        %v688 = vsel %vm687, %v680, %v684
        %v689 = vand.u32 2147483647, %v676
        %vm690 = vcmp.eq.f32.partialorder %v689, 8.507059e+37
        %v691 = vand.u32 %v676, 2147483648
        %v692 = vor.u32 1.1754944e-38, %v691
        %v693 = vsel %vm690, %v692, %v688
        %v694 = vrcp.pop %v679
        %v695 = vmul.f32 %v679, %v694
        %v696 = vsub.f32 1.0, %v695
        %v697 = vmul.f32 %v694, %v696
        %v698 = vadd.f32 %v694, %v697
        %vm699 = vweird.f32 %v679
        %vm700 = vweird.f32 %v694
        %vm701 = vmor %vm699, %vm700
        %v702 = vsel %vm701, %v694, %v698
        %v703 = vand.u32 2147483647, %v679
        %vm704 = vcmp.eq.f32.partialorder %v703, 8.507059e+37
        %v705 = vand.u32 %v679, 2147483648
        %v706 = vor.u32 1.1754944e-38, %v705
        %v707 = vsel %vm704, %v706, %v702
        %v708 = vmul.f32 %v671, %v693
        %v709 = vmul.f32 %v673, %v707
        %v710 = vsel %vm661, %v659, -inf
        %711 = vmax.xlane.f32.xlu0 %v710
        %v712 = vpop.xlane.xlu0 %711
        %v713 = vsel %vm661, %v660, -inf
        %714 = vmax.xlane.f32.xlu0 %v713
        %v715 = vpop.xlane.xlu0 %714
        %v716 = vsub.f32 %v659, %v712
        %v717 = vsub.f32 %v660, %v715
        %v718 = vmul.f32 %v716, 1.442695
        %v719 = vpow.pop %v718
        %v720 = vmul.f32 %v717, 1.442695
        %v721 = vpow.pop %v720
        %v722 = vsel %vm661, %v719, 0.0
        %723 = vadd.xlane.f32.xlu0 %v722
        %v724 = vpop.xlane.xlu0 %723
        %v725 = vsel %vm661, %v721, 0.0
        %726 = vadd.xlane.f32.xlu0 %v725
        %v727 = vpop.xlane.xlu0 %726
        %v728 = vrcp.pop %v724
        %v729 = vmul.f32 %v724, %v728
        %v730 = vsub.f32 1.0, %v729
        %v731 = vmul.f32 %v728, %v730
        %v732 = vadd.f32 %v728, %v731
        %vm733 = vweird.f32 %v724
        %vm734 = vweird.f32 %v728
        %vm735 = vmor %vm733, %vm734
        %v736 = vsel %vm735, %v728, %v732
        %v737 = vand.u32 2147483647, %v724
        %vm738 = vcmp.eq.f32.partialorder %v737, 8.507059e+37
        %v739 = vand.u32 %v724, 2147483648
        %v740 = vor.u32 1.1754944e-38, %v739
        %v741 = vsel %vm738, %v740, %v736
        %v742 = vrcp.pop %v727
        %v743 = vmul.f32 %v727, %v742
        %v744 = vsub.f32 1.0, %v743
        %v745 = vmul.f32 %v742, %v744
        %v746 = vadd.f32 %v742, %v745
        %vm747 = vweird.f32 %v727
        %vm748 = vweird.f32 %v742
        %vm749 = vmor %vm747, %vm748
        %v750 = vsel %vm749, %v742, %v746
        %v751 = vand.u32 2147483647, %v727
        %vm752 = vcmp.eq.f32.partialorder %v751, 8.507059e+37
        %v753 = vand.u32 %v727, 2147483648
        %v754 = vor.u32 1.1754944e-38, %v753
        %v755 = vsel %vm752, %v754, %v750
        %v756 = vmul.f32 %v719, %v741
        %v757 = vmul.f32 %v721, %v755
        %v758 = vld [vmem:[#allocation10] sm:$0xff]
        %v759 = vld [vmem:[#allocation10 + $0x8] sm:$0xff]
        %v760 = vld [vmem:[#allocation12] sm:$0xff]
        %v761 = vld [vmem:[#allocation12 + $0x8] sm:$0xff]
        %v763 = vsel %vm661, %v708, 0
        %765 = vmatpush.msra.mxu0 0.0
        %766 = vmatpush.msra.mxu0 0.0
        %767 = vmatpush.msra.mxu0 0.0
        %768 = vmatpush.msra.mxu0 0.0
        %769 = vmatpush.msra.mxu0 0.0
        %770 = vmatpush.msra.mxu0 0.0
        %771 = vmatpush.msra.mxu0 0.0
        %772 = vmatpush.msra.mxu0 0.0
        %773 = vmatpush.msra.mxu0 0.0
        %774 = vmatpush.msra.mxu0 0.0
        %775 = vmatpush.msra.mxu0 0.0
        %776 = vmatpush.msra.mxu0 0.0
        %777 = vmatpush.msra.mxu0 0.0
        %778 = vmatpush.msra.mxu0 0.0
        %779 = vmatpush.msra.mxu0 0.0
        %780 = vmatpush.msra.mxu0 %v758
        %781 = vmatmul.f32.gmra.mxu0 %v763
        %v782 = vpop.f32.mrf.mxu0
        %v783 = vadd.f32 0.0, %v782
        %784 = vdwg.mxu0
        %v786 = vsel %vm661, %v709, 0
        %788 = vmatpush.msra.mxu0 0.0
        %789 = vmatpush.msra.mxu0 0.0
        %790 = vmatpush.msra.mxu0 0.0
        %791 = vmatpush.msra.mxu0 0.0
        %792 = vmatpush.msra.mxu0 0.0
        %793 = vmatpush.msra.mxu0 0.0
        %794 = vmatpush.msra.mxu0 0.0
        %795 = vmatpush.msra.mxu0 0.0
        %796 = vmatpush.msra.mxu0 0.0
        %797 = vmatpush.msra.mxu0 0.0
        %798 = vmatpush.msra.mxu0 0.0
        %799 = vmatpush.msra.mxu0 0.0
        %800 = vmatpush.msra.mxu0 0.0
        %801 = vmatpush.msra.mxu0 0.0
        %802 = vmatpush.msra.mxu0 0.0
        %803 = vmatpush.msra.mxu0 %v759
        %804 = vmatmul.f32.gmra.mxu0 %v786
        %v805 = vpop.f32.mrf.mxu0
        %v806 = vadd.f32 0.0, %v805
        %807 = vdwg.mxu0
        %v809 = vsel %vm661, %v756, 0
        %811 = vmatpush.msra.mxu0 0.0
        %812 = vmatpush.msra.mxu0 0.0
        %813 = vmatpush.msra.mxu0 0.0
        %814 = vmatpush.msra.mxu0 0.0
        %815 = vmatpush.msra.mxu0 0.0
        %816 = vmatpush.msra.mxu0 0.0
        %817 = vmatpush.msra.mxu0 0.0
        %818 = vmatpush.msra.mxu0 0.0
        %819 = vmatpush.msra.mxu0 0.0
        %820 = vmatpush.msra.mxu0 0.0
        %821 = vmatpush.msra.mxu0 0.0
        %822 = vmatpush.msra.mxu0 0.0
        %823 = vmatpush.msra.mxu0 0.0
        %824 = vmatpush.msra.mxu0 0.0
        %825 = vmatpush.msra.mxu0 0.0
        %826 = vmatpush.msra.mxu0 %v760
        %827 = vmatmul.f32.gmra.mxu0 %v809
        %v828 = vpop.f32.mrf.mxu0
        %v829 = vadd.f32 0.0, %v828
        %830 = vdwg.mxu0
        %v832 = vsel %vm661, %v757, 0
        %834 = vmatpush.msra.mxu0 0.0
        %835 = vmatpush.msra.mxu0 0.0
        %836 = vmatpush.msra.mxu0 0.0
        %837 = vmatpush.msra.mxu0 0.0
        %838 = vmatpush.msra.mxu0 0.0
        %839 = vmatpush.msra.mxu0 0.0
        %840 = vmatpush.msra.mxu0 0.0
        %841 = vmatpush.msra.mxu0 0.0
        %842 = vmatpush.msra.mxu0 0.0
        %843 = vmatpush.msra.mxu0 0.0
        %844 = vmatpush.msra.mxu0 0.0
        %845 = vmatpush.msra.mxu0 0.0
        %846 = vmatpush.msra.mxu0 0.0
        %847 = vmatpush.msra.mxu0 0.0
        %848 = vmatpush.msra.mxu0 0.0
        %849 = vmatpush.msra.mxu0 %v761
        %850 = vmatmul.f32.gmra.mxu0 %v832
        %v851 = vpop.f32.mrf.mxu0
        %v852 = vadd.f32 0.0, %v851
        %853 = vdwg.mxu0
        %856 = vrot.lane.b32.xlu0 %v829, 32
        %v857 = vpop.permute.xlu0 %856
        %858 = vrot.lane.b32.xlu0 %v852, 32
        %v859 = vpop.permute.xlu0 %858
        %vm862 = vcmask 261120
        %v863 = vsel %vm862, %v783, %v857
        %v864 = vsel %vm862, %v806, %v859
        %865 = vst.msk [vmem:[%s495] sm:$0xff] %vm525, %v863
        %866 = vst.msk [vmem:[%s495 + $0x8] sm:$0xff] %vm525, %v864
        %867 = vst.msk [vmem:[%s502] sm:$0xff] %vm661, %v708
        %868 = vst.msk [vmem:[%s502 + $0x8] sm:$0xff] %vm661, %v709
        %869 = vst.msk [vmem:[%s509] sm:$0xff] %vm661, %v756
        %870 = vst.msk [vmem:[%s509 + $0x8] sm:$0xff] %vm661, %v757
        %s871 = sand.u32 %s218, 1
        %s872 = scalar_lea.sflag [#allocation6], %s871
        %s873 = sand.u32 %s218, 1
        %s874 = smul.addr %s873, 16
        %s875 = scalar_lea.vmem [#allocation15], %s874
        %s876 = sand.u32 %s36, 1
        %s877 = scalar_lea.sflag [#allocation17], %s876
        %s878 = sand.u32 %s246, 1
        %s879 = smul.addr %s878, 16
        %s880 = scalar_lea.vmem [#allocation16], %s879
        %s881 = sand.u32 %s36, 1
        %s882 = scalar_lea.sflag [#allocation17], %s881
        %s883 = sand.u32 %s274, 1
        %s884 = smul.addr %s883, 16
        %s885 = scalar_lea.vmem [#allocation18], %s884
        // Predicated region
        $region69: #{tpu_custom_call.1} parent=43 // pred_check
          %p886 = pneg %p228
        $region70: #{tpu_custom_call.1} parent=43 // pred_check_branch
          %888 = sbr.rel (%p886) target = $region72
        $region71: #{tpu_custom_call.1} parent=43 // pred_region
          %s889 = smul.u32 2, %s40
          %891 = vsyncadd %s872, 0
          %s892 = sadd.s32 %s41, %s889
          %s893 = smul.addr %s892, 8
          %s894 = scalar_lea.hbm %s7, %s893
          %s895 = sshll.u32 %s875, 4
          %s896 = int_to_ptr.vmem [resolvable:$true] %s895
          %s897 = sshll.u32 %s894, 4
          %s898 = int_to_ptr.hbm [resolvable:$true] %s897
          %903 = dma.vmem_to_hbm [thread:$0]  %s896, 256, %s898, %s872, 128, 128, 8
        $region72: #{tpu_custom_call.1} parent=43 // pred_fallthru
          _
        // Predicated region
        $region73: #{tpu_custom_call.1} parent=43 // pred_check
          %p904 = pneg %p256
        $region74: #{tpu_custom_call.1} parent=43 // pred_check_branch
          %906 = sbr.rel (%p904) target = $region76
        $region75: #{tpu_custom_call.1} parent=43 // pred_region
          %s907 = smul.u32 2, %s40
          %909 = vsyncadd %s877, 0
          %s910 = sadd.s32 %s41, %s907
          %s911 = smul.addr %s910, 8
          %s912 = scalar_lea.hbm %s8, %s911
          %s913 = sshll.u32 %s880, 4
          %s914 = int_to_ptr.vmem [resolvable:$true] %s913
          %s915 = sshll.u32 %s912, 4
          %s916 = int_to_ptr.hbm [resolvable:$true] %s915
          %921 = dma.vmem_to_hbm [thread:$0]  %s914, 256, %s916, %s877, 128, 128, 8
        $region76: #{tpu_custom_call.1} parent=43 // pred_fallthru
          _
        // Predicated region
        $region77: #{tpu_custom_call.1} parent=43 // pred_check
          %p922 = pneg %p284
        $region78: #{tpu_custom_call.1} parent=43 // pred_check_branch
          %924 = sbr.rel (%p922) target = $region80
        $region79: #{tpu_custom_call.1} parent=43 // pred_region
          %s925 = smul.u32 2, %s40
          %927 = vsyncadd %s882, 0
          %s928 = sadd.s32 %s41, %s925
          %s929 = smul.addr %s928, 8
          %s930 = scalar_lea.hbm %s9, %s929
          %s931 = sshll.u32 %s885, 4
          %s932 = int_to_ptr.vmem [resolvable:$true] %s931
          %s933 = sshll.u32 %s930, 4
          %s934 = int_to_ptr.hbm [resolvable:$true] %s933
          %939 = dma.vmem_to_hbm [thread:$0]  %s932, 256, %s934, %s882, 128, 128, 8
        $region80: #{tpu_custom_call.1} parent=43 // pred_fallthru
          _
      $region44: #{tpu_custom_call.1} parent=5 // pred_fallthru
        _
      %p940 = scmp.le.s32.totalorder 2, %s31
      // Predicated region
      $region81: #{tpu_custom_call.1} parent=5 // pred_check
        %p941 = pneg %p940
      $region82: #{tpu_custom_call.1} parent=5 // pred_check_branch
        %943 = sbr.rel (%p941) target = $region84
      $region83: #{tpu_custom_call.1} parent=5 // pred_region
        %s944 = ssub.s32 %s31, 2
        // Predicated region
        $region85: #{tpu_custom_call.1} parent=83 // pred_check
          %p945 = pneg %p234
        $region86: #{tpu_custom_call.1} parent=83 // pred_check_branch
          %947 = sbr.rel (%p945) target = $region88
        $region87: #{tpu_custom_call.1} parent=83 // pred_region
          %s948 = sand.u32 %s219, 1
          %s949 = scalar_lea.sflag [#allocation6], %s948
          %s950 = sand.u32 %s219, 1
          %s951 = smul.addr %s950, 16
          %s952 = scalar_lea.vmem [#allocation15], %s951
          %954 = dma.done %s949, 256
        $region88: #{tpu_custom_call.1} parent=83 // pred_fallthru
          _
        // Predicated region
        $region89: #{tpu_custom_call.1} parent=83 // pred_check
          %p955 = pneg %p262
        $region90: #{tpu_custom_call.1} parent=83 // pred_check_branch
          %957 = sbr.rel (%p955) target = $region92
        $region91: #{tpu_custom_call.1} parent=83 // pred_region
          %s958 = sand.u32 %s37, 1
          %s959 = scalar_lea.sflag [#allocation17], %s958
          %s960 = sand.u32 %s247, 1
          %s961 = smul.addr %s960, 16
          %s962 = scalar_lea.vmem [#allocation16], %s961
          %964 = dma.done %s959, 256
        $region92: #{tpu_custom_call.1} parent=83 // pred_fallthru
          _
        // Predicated region
        $region93: #{tpu_custom_call.1} parent=83 // pred_check
          %p965 = pneg %p290
        $region94: #{tpu_custom_call.1} parent=83 // pred_check_branch
          %967 = sbr.rel (%p965) target = $region96
        $region95: #{tpu_custom_call.1} parent=83 // pred_region
          %s968 = sand.u32 %s37, 1
          %s969 = scalar_lea.sflag [#allocation17], %s968
          %s970 = sand.u32 %s275, 1
          %s971 = smul.addr %s970, 16
          %s972 = scalar_lea.vmem [#allocation18], %s971
          %974 = dma.done %s969, 256
        $region96: #{tpu_custom_call.1} parent=83 // pred_fallthru
          _
      $region84: #{tpu_custom_call.1} parent=5 // pred_fallthru
        _
    $region6: #{tpu_custom_call.1} parent=1 // loop_footer
      %s35 = sadd.s32 1, %s31
    $region7: #{tpu_custom_call.1} parent=1 // loop_footer_branch
      %30 = sbr.rel target = $region3
    $region8: #{tpu_custom_call.1} parent=1 // loop_exit
      _
    %975 = vsyncpa [#allocation5], 1
    %s976 = scalar_lea.sflag [#allocation5], 1
    %977 = vsyncpa %s976, 1
    %978 = vsyncpa [#allocation8], 1
    %979 = vsyncpa [#allocation11], 1
    %980 = vsyncpa [#allocation14], 1
    %s981 = scalar_lea.sflag [#allocation14], 1
    %982 = vsyncpa %s981, 1
    %983 = vsyncpa [#allocation6], 1
    %s984 = scalar_lea.sflag [#allocation6], 1
    %985 = vsyncpa %s984, 1
    %986 = vsyncpa [#allocation17], 1
    %s987 = scalar_lea.sflag [#allocation17], 1
    %988 = vsyncpa %s987, 1

// kernel: tpu_custom_call.1
$region0: #{tpu_custom_call.1}
  #allocation0 [shape = 'u32[]', space=smem, size = 0x4, offset = 0x4, fixed_abs, tag = 'smem constant byte address 0x4 - core index']
  #allocation1 [shape = 'u32[72,128]{1,0:T(1,128)}', space=vmem, size = 0x9000, scoped, tag = 'internal scratch']
  #allocation2 [shape = 's32[1]{0}', space=sflag, size = 0x4, scoped, tag = 'scoped memory for tpu_custom_call.1']
  #allocation3 [shape = 'f32[1]{0:T(128)S(6)}', space=smem, size = 0x200, scoped, tag = 'prefetched SMEM operand 0']
  %s0 = inlined_call_operand.<no memory space> [shape: f32[1], index: 0, kind: input, shape index: {}]
  %s1 = inlined_call_operand.hbm [shape: f32[4,8,64], index: 1, kind: input, shape index: {}]
  %s2 = inlined_call_operand.hbm [shape: f32[4,8,64], index: 2, kind: input, shape index: {}]
  %s3 = inlined_call_operand.hbm [shape: f32[4,8,64], index: 3, kind: input, shape index: {}]
  %s4 = inlined_call_operand.hbm [shape: f32[4,8,32], index: 4, kind: input, shape index: {}]
  %s5 = inlined_call_operand.hbm [shape: f32[4,8,32], index: 5, kind: input, shape index: {}]
  %s6 = inlined_call_operand.hbm [shape: f32[4,8,8], index: 6, kind: input, shape index: {}]
  %s7 = inlined_call_operand.hbm [shape: f32[4,8,64], index: 7, kind: output, shape index: {0}]
  %s8 = inlined_call_operand.hbm [shape: f32[4,8,8], index: 8, kind: output, shape index: {1}]
  %s9 = inlined_call_operand.hbm [shape: f32[4,8,8], index: 9, kind: output, shape index: {2}]
  %10 = xla_tuple %s7, %s8, %s9
  %s11 = sld [smem:[#allocation0]]
  $region97: #{tpu_custom_call.1} parent=0
    _
  %s13 = ssub.s32 1, %s11
  %s14 = scalar_select 0, %s13, %s11
  %15 = sst [smem:[#allocation3]] %s0
  $region1: #{tpu_custom_call.1} parent=0
    #allocation4 [shape = 'u8[16384]{0}', space=vmem, size = 0x4000, scoped, tag = 'input window, operand 1']
    #allocation5 [shape = 's32[2]{0}', space=sflag, size = 0x8, scoped, tag = 'scoped memory for tpu_custom_call.1']
    #allocation6 [shape = 's32[2]{0}', space=sflag, size = 0x8, scoped, tag = 'scoped memory for tpu_custom_call.1']
    #allocation7 [shape = 'u8[16384]{0}', space=vmem, size = 0x4000, scoped, tag = 'input window, operand 2']
    #allocation8 [shape = 's32[2]{0}', space=sflag, size = 0x8, scoped, tag = 'scoped memory for tpu_custom_call.1']
    #allocation9 [shape = 'u8[16384]{0}', space=vmem, size = 0x4000, scoped, tag = 'input window, operand 3']
    #allocation10 [shape = 'u8[16384]{0}', space=vmem, size = 0x4000, scoped, tag = 'input window, operand 4']
    #allocation11 [shape = 's32[2]{0}', space=sflag, size = 0x8, scoped, tag = 'scoped memory for tpu_custom_call.1']
    #allocation12 [shape = 'u8[16384]{0}', space=vmem, size = 0x4000, scoped, tag = 'input window, operand 5']
    #allocation13 [shape = 'u8[16384]{0}', space=vmem, size = 0x4000, scoped, tag = 'input window, operand 6']
    #allocation14 [shape = 's32[2]{0}', space=sflag, size = 0x8, scoped, tag = 'scoped memory for tpu_custom_call.1']
    #allocation15 [shape = 'u8[16384]{0}', space=vmem, size = 0x4000, scoped, tag = 'output window, operand 0']
    #allocation16 [shape = 'u8[16384]{0}', space=vmem, size = 0x4000, scoped, tag = 'output window, operand 1']
    #allocation17 [shape = 's32[2]{0}', space=sflag, size = 0x8, scoped, tag = 'scoped memory for tpu_custom_call.1']
    #allocation18 [shape = 'u8[16384]{0}', space=vmem, size = 0x4000, scoped, tag = 'output window, operand 2']
    %16 = vsyncpa [#allocation5], 0
    %s17 = scalar_lea.sflag [#allocation5], 1
    %18 = vsyncpa %s17, 0
    %19 = vsyncpa [#allocation8], 0
    %s20 = scalar_lea.sflag [#allocation8], 1
    %21 = vsyncpa %s20, 0
    %22 = vsyncpa [#allocation11], 0
    %s23 = scalar_lea.sflag [#allocation11], 1
    %24 = vsyncpa %s23, 0
    %25 = vsyncpa [#allocation14], 0
    %s26 = scalar_lea.sflag [#allocation14], 1
    %27 = vsyncpa %s26, 0
    %28 = vsyncpa [#allocation6], 0
    %s29 = scalar_lea.sflag [#allocation6], 1
    %30 = vsyncpa %s29, 0
    %31 = vsyncpa [#allocation17], 0
    %s32 = scalar_lea.sflag [#allocation17], 1
    %33 = vsyncpa %s32, 0
    loop: start=0, step=1, limit=4
    $region2: #{tpu_custom_call.1} parent=1 // loop_pre_header
      _
    $region3: #{tpu_custom_call.1} parent=1 // loop_header
      %s35 = sphi 0, %s39
      %p36 = scmp.ge.s32.totalorder %s35, 4
      %s42 = sphi 0, %s54
      %s43 = sphi 0, %s50
      %s44 = sphi 0, %s42
      %s45 = sphi 0, %s43
      %s46 = sphi 0, %s44
      %s47 = sphi 0, %s45
      %s59 = sphi 0, %s61
      %s62 = sphi 0, %s59
      %s63 = sphi 0, %s62
      %s79 = sphi 0, %s63
      %s85 = sphi 0, %s87
      %s88 = sphi 0, %s85
      %s89 = sphi 0, %s88
      %s105 = sphi 0, %s89
      %s111 = sphi 0, %s113
      %s114 = sphi 0, %s111
      %s115 = sphi 0, %s114
      %s131 = sphi 0, %s115
      %s137 = sphi 0, %s139
      %s140 = sphi 0, %s137
      %s141 = sphi 0, %s140
      %s157 = sphi 0, %s141
      %s163 = sphi 0, %s165
      %s166 = sphi 0, %s163
      %s167 = sphi 0, %s166
      %s183 = sphi 0, %s167
      %s191 = sphi 0, %s193
      %s194 = sphi 0, %s191
      %s195 = sphi 0, %s194
      %s211 = sphi 0, %s195
      %s219 = sphi 0, %s221
      %s222 = sphi 0, %s219
      %s223 = sphi 0, %s222
      %s239 = sphi 0, %s223
      %s247 = sphi 0, %s249
      %s250 = sphi 0, %s247
      %s251 = sphi 0, %s250
      %s267 = sphi 0, %s251
      %s275 = sphi 0, %s277
      %s278 = sphi 0, %s275
      %s279 = sphi 0, %s278
      %s295 = sphi 0, %s279
    $region4: #{tpu_custom_call.1} parent=1 // loop_header_branch
      %38 = sbr.rel (%p36) target = $region8
    $region5: #{tpu_custom_call.1} parent=1 // loop_body
      %s40 = ssub.s32 %s35, 1
      %s41 = ssub.s32 %s35, 2
      %s48 = sadd.s32 1, %s43
      %p49 = scmp.ge.s32.totalorder %s48, 1
      %s50 = scalar_select %p49, 0, %s48
      %s51 = sadd.s32 1, %s42
      %s52 = scalar_select %p49, %s51, %s42
      %p53 = scmp.ge.s32.totalorder %s52, 2
      %s54 = scalar_select %p53, 0, %s52
      %s55 = ssub.s32 %s42, %s54
      %s56 = ssub.s32 %s43, %s50
      %s57 = sor.u32 %s55, %s56
      %p58 = scmp.eq.s32.totalorder %s57, 0
      %s60 = sadd.s32 %s59, 1
      %s61 = scalar_select %p58, %s59, %s60
      %p64 = pneg %p58
      %p65 = scmp.eq.s32.totalorder %s35, 1
      %p66 = por %p64, %p65
      %p67 = scmp.ne.s32.totalorder %s59, %s62
      %p68 = scmp.eq.s32.totalorder %s35, 0
      %p69 = por %p67, %p68
      %p70 = scmp.ne.s32.totalorder %s59, %s62
      %p71 = scmp.eq.s32.totalorder %s40, 1
      %p72 = por %p70, %p71
      %p73 = scmp.ne.s32.totalorder %s62, %s63
      %p74 = scmp.eq.s32.totalorder %s40, 0
      %p75 = por %p73, %p74
      %p76 = scmp.ne.s32.totalorder %s62, %s63
      %p77 = scmp.eq.s32.totalorder %s41, 1
      %p78 = por %p76, %p77
      %p80 = scmp.ne.s32.totalorder %s63, %s79
      %p81 = scmp.eq.s32.totalorder %s41, 0
      %p82 = por %p80, %p81
      %s83 = ssub.s32 %s42, %s54
      %p84 = scmp.eq.s32.totalorder %s83, 0
      %s86 = sadd.s32 %s85, 1
      %s87 = scalar_select %p84, %s85, %s86
      %p90 = pneg %p84
      %p91 = scmp.eq.s32.totalorder %s35, 1
      %p92 = por %p90, %p91
      %p93 = scmp.ne.s32.totalorder %s85, %s88
      %p94 = scmp.eq.s32.totalorder %s35, 0
      %p95 = por %p93, %p94
      %p96 = scmp.ne.s32.totalorder %s85, %s88
      %p97 = scmp.eq.s32.totalorder %s40, 1
      %p98 = por %p96, %p97
      %p99 = scmp.ne.s32.totalorder %s88, %s89
      %p100 = scmp.eq.s32.totalorder %s40, 0
      %p101 = por %p99, %p100
      %p102 = scmp.ne.s32.totalorder %s88, %s89
      %p103 = scmp.eq.s32.totalorder %s41, 1
      %p104 = por %p102, %p103
      %p106 = scmp.ne.s32.totalorder %s89, %s105
      %p107 = scmp.eq.s32.totalorder %s41, 0
      %p108 = por %p106, %p107
      %s109 = ssub.s32 %s42, %s54
      %p110 = scmp.eq.s32.totalorder %s109, 0
      %s112 = sadd.s32 %s111, 1
      %s113 = scalar_select %p110, %s111, %s112
      %p116 = pneg %p110
      %p117 = scmp.eq.s32.totalorder %s35, 1
      %p118 = por %p116, %p117
      %p119 = scmp.ne.s32.totalorder %s111, %s114
      %p120 = scmp.eq.s32.totalorder %s35, 0
      %p121 = por %p119, %p120
      %p122 = scmp.ne.s32.totalorder %s111, %s114
      %p123 = scmp.eq.s32.totalorder %s40, 1
      %p124 = por %p122, %p123
      %p125 = scmp.ne.s32.totalorder %s114, %s115
      %p126 = scmp.eq.s32.totalorder %s40, 0
      %p127 = por %p125, %p126
      %p128 = scmp.ne.s32.totalorder %s114, %s115
      %p129 = scmp.eq.s32.totalorder %s41, 1
      %p130 = por %p128, %p129
      %p132 = scmp.ne.s32.totalorder %s115, %s131
      %p133 = scmp.eq.s32.totalorder %s41, 0
      %p134 = por %p132, %p133
      %s135 = ssub.s32 %s42, %s54
      %p136 = scmp.eq.s32.totalorder %s135, 0
      %s138 = sadd.s32 %s137, 1
      %s139 = scalar_select %p136, %s137, %s138
      %p142 = pneg %p136
      %p143 = scmp.eq.s32.totalorder %s35, 1
      %p144 = por %p142, %p143
      %p145 = scmp.ne.s32.totalorder %s137, %s140
      %p146 = scmp.eq.s32.totalorder %s35, 0
      %p147 = por %p145, %p146
      %p148 = scmp.ne.s32.totalorder %s137, %s140
      %p149 = scmp.eq.s32.totalorder %s40, 1
      %p150 = por %p148, %p149
      %p151 = scmp.ne.s32.totalorder %s140, %s141
      %p152 = scmp.eq.s32.totalorder %s40, 0
      %p153 = por %p151, %p152
      %p154 = scmp.ne.s32.totalorder %s140, %s141
      %p155 = scmp.eq.s32.totalorder %s41, 1
      %p156 = por %p154, %p155
      %p158 = scmp.ne.s32.totalorder %s141, %s157
      %p159 = scmp.eq.s32.totalorder %s41, 0
      %p160 = por %p158, %p159
      %s161 = ssub.s32 %s42, %s54
      %p162 = scmp.eq.s32.totalorder %s161, 0
      %s164 = sadd.s32 %s163, 1
      %s165 = scalar_select %p162, %s163, %s164
      %p168 = pneg %p162
      %p169 = scmp.eq.s32.totalorder %s35, 1
      %p170 = por %p168, %p169
      %p171 = scmp.ne.s32.totalorder %s163, %s166
      %p172 = scmp.eq.s32.totalorder %s35, 0
      %p173 = por %p171, %p172
      %p174 = scmp.ne.s32.totalorder %s163, %s166
      %p175 = scmp.eq.s32.totalorder %s40, 1
      %p176 = por %p174, %p175
      %p177 = scmp.ne.s32.totalorder %s166, %s167
      %p178 = scmp.eq.s32.totalorder %s40, 0
      %p179 = por %p177, %p178
      %p180 = scmp.ne.s32.totalorder %s166, %s167
      %p181 = scmp.eq.s32.totalorder %s41, 1
      %p182 = por %p180, %p181
      %p184 = scmp.ne.s32.totalorder %s167, %s183
      %p185 = scmp.eq.s32.totalorder %s41, 0
      %p186 = por %p184, %p185
      %s187 = ssub.s32 %s42, %s54
      %s188 = ssub.s32 %s43, %s50
      %s189 = sor.u32 %s187, %s188
      %p190 = scmp.eq.s32.totalorder %s189, 0
      %s192 = sadd.s32 %s191, 1
      %s193 = scalar_select %p190, %s191, %s192
      %p196 = pneg %p190
      %p197 = scmp.eq.s32.totalorder %s35, 1
      %p198 = por %p196, %p197
      %p199 = scmp.ne.s32.totalorder %s191, %s194
      %p200 = scmp.eq.s32.totalorder %s35, 0
      %p201 = por %p199, %p200
      %p202 = scmp.ne.s32.totalorder %s191, %s194
      %p203 = scmp.eq.s32.totalorder %s40, 1
      %p204 = por %p202, %p203
      %p205 = scmp.ne.s32.totalorder %s194, %s195
      %p206 = scmp.eq.s32.totalorder %s40, 0
      %p207 = por %p205, %p206
      %p208 = scmp.ne.s32.totalorder %s194, %s195
      %p209 = scmp.eq.s32.totalorder %s41, 1
      %p210 = por %p208, %p209
      %p212 = scmp.ne.s32.totalorder %s195, %s211
      %p213 = scmp.eq.s32.totalorder %s41, 0
      %p214 = por %p212, %p213
      %s215 = ssub.s32 %s42, %s54
      %s216 = ssub.s32 %s43, %s50
      %s217 = sor.u32 %s215, %s216
      %p218 = scmp.eq.s32.totalorder %s217, 0
      %s220 = sadd.s32 %s219, 1
      %s221 = scalar_select %p218, %s219, %s220
      %p224 = pneg %p218
      %p225 = scmp.eq.s32.totalorder %s35, 1
      %p226 = por %p224, %p225
      %p227 = scmp.ne.s32.totalorder %s219, %s222
      %p228 = scmp.eq.s32.totalorder %s35, 0
      %p229 = por %p227, %p228
      %p230 = scmp.ne.s32.totalorder %s219, %s222
      %p231 = scmp.eq.s32.totalorder %s40, 1
      %p232 = por %p230, %p231
      %p233 = scmp.ne.s32.totalorder %s222, %s223
      %p234 = scmp.eq.s32.totalorder %s40, 0
      %p235 = por %p233, %p234
      %p236 = scmp.ne.s32.totalorder %s222, %s223
      %p237 = scmp.eq.s32.totalorder %s41, 1
      %p238 = por %p236, %p237
      %p240 = scmp.ne.s32.totalorder %s223, %s239
      %p241 = scmp.eq.s32.totalorder %s41, 0
      %p242 = por %p240, %p241
      %s243 = ssub.s32 %s42, %s54
      %s244 = ssub.s32 %s43, %s50
      %s245 = sor.u32 %s243, %s244
      %p246 = scmp.eq.s32.totalorder %s245, 0
      %s248 = sadd.s32 %s247, 1
      %s249 = scalar_select %p246, %s247, %s248
      %p252 = pneg %p246
      %p253 = scmp.eq.s32.totalorder %s35, 1
      %p254 = por %p252, %p253
      %p255 = scmp.ne.s32.totalorder %s247, %s250
      %p256 = scmp.eq.s32.totalorder %s35, 0
      %p257 = por %p255, %p256
      %p258 = scmp.ne.s32.totalorder %s247, %s250
      %p259 = scmp.eq.s32.totalorder %s40, 1
      %p260 = por %p258, %p259
      %p261 = scmp.ne.s32.totalorder %s250, %s251
      %p262 = scmp.eq.s32.totalorder %s40, 0
      %p263 = por %p261, %p262
      %p264 = scmp.ne.s32.totalorder %s250, %s251
      %p265 = scmp.eq.s32.totalorder %s41, 1
      %p266 = por %p264, %p265
      %p268 = scmp.ne.s32.totalorder %s251, %s267
      %p269 = scmp.eq.s32.totalorder %s41, 0
      %p270 = por %p268, %p269
      %s271 = ssub.s32 %s42, %s54
      %s272 = ssub.s32 %s43, %s50
      %s273 = sor.u32 %s271, %s272
      %p274 = scmp.eq.s32.totalorder %s273, 0
      %s276 = sadd.s32 %s275, 1
      %s277 = scalar_select %p274, %s275, %s276
      %p280 = pneg %p274
      %p281 = scmp.eq.s32.totalorder %s35, 1
      %p282 = por %p280, %p281
      %p283 = scmp.ne.s32.totalorder %s275, %s278
      %p284 = scmp.eq.s32.totalorder %s35, 0
      %p285 = por %p283, %p284
      %p286 = scmp.ne.s32.totalorder %s275, %s278
      %p287 = scmp.eq.s32.totalorder %s40, 1
      %p288 = por %p286, %p287
      %p289 = scmp.ne.s32.totalorder %s278, %s279
      %p290 = scmp.eq.s32.totalorder %s40, 0
      %p291 = por %p289, %p290
      %p292 = scmp.ne.s32.totalorder %s278, %s279
      %p293 = scmp.eq.s32.totalorder %s41, 1
      %p294 = por %p292, %p293
      %p296 = scmp.ne.s32.totalorder %s279, %s295
      %p297 = scmp.eq.s32.totalorder %s41, 0
      %p298 = por %p296, %p297
      %p299 = scmp.le.s32.totalorder 1, %s35
      %p300 = scmp.lt.s32.totalorder %s35, 3
      %p301 = pnand %p299, %p300
      %p302 = pneg %p301
      // Predicated region
      $region9: #{tpu_custom_call.1} parent=5 // pred_check
        _
      $region10: #{tpu_custom_call.1} parent=5 // pred_check_branch
        %304 = sbr.rel (%p301) target = $region12
      $region11: #{tpu_custom_call.1} parent=5 // pred_region
        %s305 = ssub.s32 %s35, 1
      $region12: #{tpu_custom_call.1} parent=5 // pred_fallthru
        _
      %p306 = scmp.lt.s32.totalorder %s35, 2
      // Predicated region
      $region13: #{tpu_custom_call.1} parent=5 // pred_check
        %p307 = pneg %p306
      $region14: #{tpu_custom_call.1} parent=5 // pred_check_branch
        %309 = sbr.rel (%p307) target = $region16
      $region15: #{tpu_custom_call.1} parent=5 // pred_region
        // Predicated region
        $region17: #{tpu_custom_call.1} parent=15 // pred_check
          %p310 = pneg %p69
        $region18: #{tpu_custom_call.1} parent=15 // pred_check_branch
          %312 = sbr.rel (%p310) target = $region20
        $region19: #{tpu_custom_call.1} parent=15 // pred_region
          %s313 = sand.u32 %s59, 1
          %s314 = scalar_lea.sflag [#allocation5], %s313
          %s315 = sand.u32 %s59, 1
          %s316 = smul.addr %s315, 16
          %s317 = scalar_lea.vmem [#allocation4], %s316
          %s318 = smul.u32 2, %s42
          %320 = vsyncadd %s314, 0
          %s321 = sadd.s32 %s43, %s318
          %s322 = smul.addr %s321, 8
          %s323 = scalar_lea.hbm %s1, %s322
          %s324 = sshll.u32 %s323, 4
          %s325 = int_to_ptr.hbm [resolvable:$true] %s324
          %s326 = sshll.u32 %s317, 4
          %s327 = int_to_ptr.vmem [resolvable:$true] %s326
          %332 = dma.hbm_to_vmem [thread:$0]  %s325, 256, %s327, %s314, 128, 128, 8
        $region20: #{tpu_custom_call.1} parent=15 // pred_fallthru
          _
        // Predicated region
        $region21: #{tpu_custom_call.1} parent=15 // pred_check
          %p333 = pneg %p95
        $region22: #{tpu_custom_call.1} parent=15 // pred_check_branch
          %335 = sbr.rel (%p333) target = $region24
        $region23: #{tpu_custom_call.1} parent=15 // pred_region
          %s336 = sand.u32 %s35, 1
          %s337 = scalar_lea.sflag [#allocation8], %s336
          %s338 = sand.u32 %s85, 1
          %s339 = smul.addr %s338, 16
          %s340 = scalar_lea.vmem [#allocation7], %s339
          %s341 = smul.u32 2, %s42
          %343 = vsyncadd %s337, 0
          %s344 = smul.addr %s341, 8
          %s345 = scalar_lea.hbm %s2, %s344
          %s346 = sshll.u32 %s345, 4
          %s347 = int_to_ptr.hbm [resolvable:$true] %s346
          %s348 = sshll.u32 %s340, 4
          %s349 = int_to_ptr.vmem [resolvable:$true] %s348
          %354 = dma.hbm_to_vmem [thread:$0]  %s347, 256, %s349, %s337, 128, 128, 8
        $region24: #{tpu_custom_call.1} parent=15 // pred_fallthru
          _
        // Predicated region
        $region25: #{tpu_custom_call.1} parent=15 // pred_check
          %p355 = pneg %p121
        $region26: #{tpu_custom_call.1} parent=15 // pred_check_branch
          %357 = sbr.rel (%p355) target = $region28
        $region27: #{tpu_custom_call.1} parent=15 // pred_region
          %s358 = sand.u32 %s35, 1
          %s359 = scalar_lea.sflag [#allocation8], %s358
          %s360 = sand.u32 %s111, 1
          %s361 = smul.addr %s360, 16
          %s362 = scalar_lea.vmem [#allocation9], %s361
          %s363 = smul.u32 2, %s42
          %365 = vsyncadd %s359, 0
          %s366 = smul.addr %s363, 8
          %s367 = scalar_lea.hbm %s3, %s366
          %s368 = sshll.u32 %s367, 4
          %s369 = int_to_ptr.hbm [resolvable:$true] %s368
          %s370 = sshll.u32 %s362, 4
          %s371 = int_to_ptr.vmem [resolvable:$true] %s370
          %376 = dma.hbm_to_vmem [thread:$0]  %s369, 256, %s371, %s359, 128, 128, 8
        $region28: #{tpu_custom_call.1} parent=15 // pred_fallthru
          _
        // Predicated region
        $region29: #{tpu_custom_call.1} parent=15 // pred_check
          %p377 = pneg %p147
        $region30: #{tpu_custom_call.1} parent=15 // pred_check_branch
          %379 = sbr.rel (%p377) target = $region32
        $region31: #{tpu_custom_call.1} parent=15 // pred_region
          %s380 = sand.u32 %s35, 1
          %s381 = scalar_lea.sflag [#allocation11], %s380
          %s382 = sand.u32 %s137, 1
          %s383 = smul.addr %s382, 16
          %s384 = scalar_lea.vmem [#allocation10], %s383
          %s385 = smul.u32 2, %s42
          %387 = vsyncadd %s381, 0
          %s388 = smul.addr %s385, 8
          %s389 = scalar_lea.hbm %s4, %s388
          %s390 = sshll.u32 %s389, 4
          %s391 = int_to_ptr.hbm [resolvable:$true] %s390
          %s392 = sshll.u32 %s384, 4
          %s393 = int_to_ptr.vmem [resolvable:$true] %s392
          %398 = dma.hbm_to_vmem [thread:$0]  %s391, 256, %s393, %s381, 128, 128, 8
        $region32: #{tpu_custom_call.1} parent=15 // pred_fallthru
          _
        // Predicated region
        $region33: #{tpu_custom_call.1} parent=15 // pred_check
          %p399 = pneg %p173
        $region34: #{tpu_custom_call.1} parent=15 // pred_check_branch
          %401 = sbr.rel (%p399) target = $region36
        $region35: #{tpu_custom_call.1} parent=15 // pred_region
          %s402 = sand.u32 %s35, 1
          %s403 = scalar_lea.sflag [#allocation11], %s402
          %s404 = sand.u32 %s163, 1
          %s405 = smul.addr %s404, 16
          %s406 = scalar_lea.vmem [#allocation12], %s405
          %s407 = smul.u32 2, %s42
          %409 = vsyncadd %s403, 0
          %s410 = smul.addr %s407, 8
          %s411 = scalar_lea.hbm %s5, %s410
          %s412 = sshll.u32 %s411, 4
          %s413 = int_to_ptr.hbm [resolvable:$true] %s412
          %s414 = sshll.u32 %s406, 4
          %s415 = int_to_ptr.vmem [resolvable:$true] %s414
          %420 = dma.hbm_to_vmem [thread:$0]  %s413, 256, %s415, %s403, 128, 128, 8
        $region36: #{tpu_custom_call.1} parent=15 // pred_fallthru
          _
        // Predicated region
        $region37: #{tpu_custom_call.1} parent=15 // pred_check
          %p421 = pneg %p201
        $region38: #{tpu_custom_call.1} parent=15 // pred_check_branch
          %423 = sbr.rel (%p421) target = $region40
        $region39: #{tpu_custom_call.1} parent=15 // pred_region
          %s424 = sand.u32 %s191, 1
          %s425 = scalar_lea.sflag [#allocation14], %s424
          %s426 = sand.u32 %s191, 1
          %s427 = smul.addr %s426, 16
          %s428 = scalar_lea.vmem [#allocation13], %s427
          %s429 = smul.u32 2, %s42
          %431 = vsyncadd %s425, 0
          %s432 = sadd.s32 %s43, %s429
          %s433 = smul.addr %s432, 8
          %s434 = scalar_lea.hbm %s6, %s433
          %s435 = sshll.u32 %s434, 4
          %s436 = int_to_ptr.hbm [resolvable:$true] %s435
          %s437 = sshll.u32 %s428, 4
          %s438 = int_to_ptr.vmem [resolvable:$true] %s437
          %443 = dma.hbm_to_vmem [thread:$0]  %s436, 256, %s438, %s425, 128, 128, 8
        $region40: #{tpu_custom_call.1} parent=15 // pred_fallthru
          _
      $region16: #{tpu_custom_call.1} parent=5 // pred_fallthru
        _
      %p444 = scmp.le.s32.totalorder 1, %s35
      %p445 = scmp.lt.s32.totalorder %s35, 3
      %p446 = pnand %p444, %p445
      %p447 = pneg %p446
      // Predicated region
      $region41: #{tpu_custom_call.1} parent=5 // pred_check
        _
      $region42: #{tpu_custom_call.1} parent=5 // pred_check_branch
        %449 = sbr.rel (%p446) target = $region44
      $region43: #{tpu_custom_call.1} parent=5 // pred_region
        %s450 = ssub.s32 %s35, 1
        %s451 = sand.u32 %s62, 1
        %s452 = scalar_lea.sflag [#allocation5], %s451
        %s453 = sand.u32 %s62, 1
        %s454 = smul.addr %s453, 16
        %s455 = scalar_lea.vmem [#allocation4], %s454
        // Predicated region
        $region45: #{tpu_custom_call.1} parent=43 // pred_check
          %p456 = pneg %p75
        $region46: #{tpu_custom_call.1} parent=43 // pred_check_branch
          %458 = sbr.rel (%p456) target = $region48
        $region47: #{tpu_custom_call.1} parent=43 // pred_region
          %460 = dma.done %s452, 256
        $region48: #{tpu_custom_call.1} parent=43 // pred_fallthru
          _
        %s461 = sand.u32 %s40, 1
        %s462 = scalar_lea.sflag [#allocation8], %s461
        %s463 = sand.u32 %s88, 1
        %s464 = smul.addr %s463, 16
        %s465 = scalar_lea.vmem [#allocation7], %s464
        // Predicated region
        $region49: #{tpu_custom_call.1} parent=43 // pred_check
          %p466 = pneg %p101
        $region50: #{tpu_custom_call.1} parent=43 // pred_check_branch
          %468 = sbr.rel (%p466) target = $region52
        $region51: #{tpu_custom_call.1} parent=43 // pred_region
          %470 = dma.done %s462, 256
        $region52: #{tpu_custom_call.1} parent=43 // pred_fallthru
          _
        %s471 = sand.u32 %s40, 1
        %s472 = scalar_lea.sflag [#allocation8], %s471
        %s473 = sand.u32 %s114, 1
        %s474 = smul.addr %s473, 16
        %s475 = scalar_lea.vmem [#allocation9], %s474
        // Predicated region
        $region53: #{tpu_custom_call.1} parent=43 // pred_check
          %p476 = pneg %p127
        $region54: #{tpu_custom_call.1} parent=43 // pred_check_branch
          %478 = sbr.rel (%p476) target = $region56
        $region55: #{tpu_custom_call.1} parent=43 // pred_region
          %480 = dma.done %s472, 256
        $region56: #{tpu_custom_call.1} parent=43 // pred_fallthru
          _
        %s481 = sand.u32 %s40, 1
        %s482 = scalar_lea.sflag [#allocation11], %s481
        %s483 = sand.u32 %s140, 1
        %s484 = smul.addr %s483, 16
        %s485 = scalar_lea.vmem [#allocation10], %s484
        // Predicated region
        $region57: #{tpu_custom_call.1} parent=43 // pred_check
          %p486 = pneg %p153
        $region58: #{tpu_custom_call.1} parent=43 // pred_check_branch
          %488 = sbr.rel (%p486) target = $region60
        $region59: #{tpu_custom_call.1} parent=43 // pred_region
          %490 = dma.done %s482, 256
        $region60: #{tpu_custom_call.1} parent=43 // pred_fallthru
          _
        %s491 = sand.u32 %s40, 1
        %s492 = scalar_lea.sflag [#allocation11], %s491
        %s493 = sand.u32 %s166, 1
        %s494 = smul.addr %s493, 16
        %s495 = scalar_lea.vmem [#allocation12], %s494
        // Predicated region
        $region61: #{tpu_custom_call.1} parent=43 // pred_check
          %p496 = pneg %p179
        $region62: #{tpu_custom_call.1} parent=43 // pred_check_branch
          %498 = sbr.rel (%p496) target = $region64
        $region63: #{tpu_custom_call.1} parent=43 // pred_region
          %500 = dma.done %s492, 256
        $region64: #{tpu_custom_call.1} parent=43 // pred_fallthru
          _
        %s501 = sand.u32 %s194, 1
        %s502 = scalar_lea.sflag [#allocation14], %s501
        %s503 = sand.u32 %s194, 1
        %s504 = smul.addr %s503, 16
        %s505 = scalar_lea.vmem [#allocation13], %s504
        // Predicated region
        $region65: #{tpu_custom_call.1} parent=43 // pred_check
          %p506 = pneg %p207
        $region66: #{tpu_custom_call.1} parent=43 // pred_check_branch
          %508 = sbr.rel (%p506) target = $region68
        $region67: #{tpu_custom_call.1} parent=43 // pred_region
          %510 = dma.done %s502, 256
        $region68: #{tpu_custom_call.1} parent=43 // pred_fallthru
          _
        %s511 = sand.u32 %s62, 1
        %s512 = scalar_lea.sflag [#allocation5], %s511
        %s513 = sand.u32 %s62, 1
        %s514 = smul.addr %s513, 16
        %s515 = scalar_lea.vmem [#allocation4], %s514
        %p516 = pneg %p75
        %p517 = pneg %p72
        %s518 = sand.u32 %s40, 1
        %s519 = scalar_lea.sflag [#allocation8], %s518
        %s520 = sand.u32 %s88, 1
        %s521 = smul.addr %s520, 16
        %s522 = scalar_lea.vmem [#allocation7], %s521
        %p523 = pneg %p101
        %p524 = pneg %p98
        %s525 = sand.u32 %s40, 1
        %s526 = scalar_lea.sflag [#allocation8], %s525
        %s527 = sand.u32 %s114, 1
        %s528 = smul.addr %s527, 16
        %s529 = scalar_lea.vmem [#allocation9], %s528
        %p530 = pneg %p127
        %p531 = pneg %p124
        %s532 = sand.u32 %s40, 1
        %s533 = scalar_lea.sflag [#allocation11], %s532
        %s534 = sand.u32 %s140, 1
        %s535 = smul.addr %s534, 16
        %s536 = scalar_lea.vmem [#allocation10], %s535
        %p537 = pneg %p153
        %p538 = pneg %p150
        %s539 = sand.u32 %s40, 1
        %s540 = scalar_lea.sflag [#allocation11], %s539
        %s541 = sand.u32 %s166, 1
        %s542 = smul.addr %s541, 16
        %s543 = scalar_lea.vmem [#allocation12], %s542
        %p544 = pneg %p179
        %p545 = pneg %p176
        %s546 = sand.u32 %s194, 1
        %s547 = scalar_lea.sflag [#allocation14], %s546
        %s548 = sand.u32 %s194, 1
        %s549 = smul.addr %s548, 16
        %s550 = scalar_lea.vmem [#allocation13], %s549
        %p551 = pneg %p207
        %p552 = pneg %p204
        %p553 = pneg %p235
        %p554 = pneg %p232
        %s555 = sand.u32 %s222, 1
        %s556 = scalar_lea.sflag [#allocation6], %s555
        %s557 = sand.u32 %s222, 1
        %s558 = smul.addr %s557, 16
        %s559 = scalar_lea.vmem [#allocation15], %s558
        %p560 = pneg %p263
        %p561 = pneg %p260
        %s562 = sand.u32 %s40, 1
        %s563 = scalar_lea.sflag [#allocation17], %s562
        %s564 = sand.u32 %s250, 1
        %s565 = smul.addr %s564, 16
        %s566 = scalar_lea.vmem [#allocation16], %s565
        %p567 = pneg %p291
        %p568 = pneg %p288
        %s569 = sand.u32 %s40, 1
        %s570 = scalar_lea.sflag [#allocation17], %s569
        %s571 = sand.u32 %s278, 1
        %s572 = smul.addr %s571, 16
        %s573 = scalar_lea.vmem [#allocation18], %s572
        %s574 = smul.u32 2, %s44
        %s575 = smul.u32 2, %s44
        %s576 = smul.u32 2, %s44
        %s577 = smul.u32 2, %s44
        %s578 = smul.u32 2, %s44
        %s579 = smul.u32 2, %s44
        %s580 = smul.u32 2, %s44
        %s581 = smul.u32 2, %s44
        %s582 = smul.u32 2, %s44
        %v583 = vld [vmem:[%s455] sm:$0xff]
        %v584 = vld [vmem:[%s455 + $0x8] sm:$0xff]
        %v585 = vld [vmem:[%s465] sm:$0xff]
        %v586 = vld [vmem:[%s465 + $0x8] sm:$0xff]
        %v587 = vld [vmem:[%s475] sm:$0xff]
        %v588 = vld [vmem:[%s475 + $0x8] sm:$0xff]
        %vm589 = vcmask 523264
        %v591 = vsel %vm589, %v583, 0
        %v594 = vsel %vm589, %v585, 0
        %596 = vmatpush.xpose.msra.mxu0 0.0
        %597 = vmatpush.xpose.msra.mxu0 0.0
        %598 = vmatpush.xpose.msra.mxu0 0.0
        %599 = vmatpush.xpose.msra.mxu0 0.0
        %600 = vmatpush.xpose.msra.mxu0 0.0
        %601 = vmatpush.xpose.msra.mxu0 0.0
        %602 = vmatpush.xpose.msra.mxu0 0.0
        %603 = vmatpush.xpose.msra.mxu0 0.0
        %604 = vmatpush.xpose.msra.mxu0 0.0
        %605 = vmatpush.xpose.msra.mxu0 0.0
        %606 = vmatpush.xpose.msra.mxu0 0.0
        %607 = vmatpush.xpose.msra.mxu0 0.0
        %608 = vmatpush.xpose.msra.mxu0 0.0
        %609 = vmatpush.xpose.msra.mxu0 0.0
        %610 = vmatpush.xpose.msra.mxu0 0.0
        %611 = vmatpush.xpose.msra.mxu0 %v594
        %612 = vmatmul.f32.gmra.mxu0 %v591
        %v613 = vpop.f32.mrf.mxu0
        %v614 = vadd.f32 0.0, %v613
        %615 = vdwg.mxu0
        %v617 = vsel %vm589, %v584, 0
        %v620 = vsel %vm589, %v586, 0
        %622 = vmatpush.xpose.msra.mxu0 0.0
        %623 = vmatpush.xpose.msra.mxu0 0.0
        %624 = vmatpush.xpose.msra.mxu0 0.0
        %625 = vmatpush.xpose.msra.mxu0 0.0
        %626 = vmatpush.xpose.msra.mxu0 0.0
        %627 = vmatpush.xpose.msra.mxu0 0.0
        %628 = vmatpush.xpose.msra.mxu0 0.0
        %629 = vmatpush.xpose.msra.mxu0 0.0
        %630 = vmatpush.xpose.msra.mxu0 0.0
        %631 = vmatpush.xpose.msra.mxu0 0.0
        %632 = vmatpush.xpose.msra.mxu0 0.0
        %633 = vmatpush.xpose.msra.mxu0 0.0
        %634 = vmatpush.xpose.msra.mxu0 0.0
        %635 = vmatpush.xpose.msra.mxu0 0.0
        %636 = vmatpush.xpose.msra.mxu0 0.0
        %637 = vmatpush.xpose.msra.mxu0 %v620
        %638 = vmatmul.f32.gmra.mxu0 %v617
        %v639 = vpop.f32.mrf.mxu0
        %v640 = vadd.f32 0.0, %v639
        %641 = vdwg.mxu0
        %v643 = vsel %vm589, %v587, 0
        %645 = vmatpush.xpose.msra.mxu0 0.0
        %646 = vmatpush.xpose.msra.mxu0 0.0
        %647 = vmatpush.xpose.msra.mxu0 0.0
        %648 = vmatpush.xpose.msra.mxu0 0.0
        %649 = vmatpush.xpose.msra.mxu0 0.0
        %650 = vmatpush.xpose.msra.mxu0 0.0
        %651 = vmatpush.xpose.msra.mxu0 0.0
        %652 = vmatpush.xpose.msra.mxu0 0.0
        %653 = vmatpush.xpose.msra.mxu0 0.0
        %654 = vmatpush.xpose.msra.mxu0 0.0
        %655 = vmatpush.xpose.msra.mxu0 0.0
        %656 = vmatpush.xpose.msra.mxu0 0.0
        %657 = vmatpush.xpose.msra.mxu0 0.0
        %658 = vmatpush.xpose.msra.mxu0 0.0
        %659 = vmatpush.xpose.msra.mxu0 0.0
        %660 = vmatpush.xpose.msra.mxu0 %v643
        %661 = vmatmul.f32.gmra.mxu0 %v591
        %v662 = vpop.f32.mrf.mxu0
        %v663 = vadd.f32 0.0, %v662
        %664 = vdwg.mxu0
        %v666 = vsel %vm589, %v588, 0
        %668 = vmatpush.xpose.msra.mxu0 0.0
        %669 = vmatpush.xpose.msra.mxu0 0.0
        %670 = vmatpush.xpose.msra.mxu0 0.0
        %671 = vmatpush.xpose.msra.mxu0 0.0
        %672 = vmatpush.xpose.msra.mxu0 0.0
        %673 = vmatpush.xpose.msra.mxu0 0.0
        %674 = vmatpush.xpose.msra.mxu0 0.0
        %675 = vmatpush.xpose.msra.mxu0 0.0
        %676 = vmatpush.xpose.msra.mxu0 0.0
        %677 = vmatpush.xpose.msra.mxu0 0.0
        %678 = vmatpush.xpose.msra.mxu0 0.0
        %679 = vmatpush.xpose.msra.mxu0 0.0
        %680 = vmatpush.xpose.msra.mxu0 0.0
        %681 = vmatpush.xpose.msra.mxu0 0.0
        %682 = vmatpush.xpose.msra.mxu0 0.0
        %683 = vmatpush.xpose.msra.mxu0 %v666
        %684 = vmatmul.f32.gmra.mxu0 %v617
        %v685 = vpop.f32.mrf.mxu0
        %v686 = vadd.f32 0.0, %v685
        %687 = vdwg.mxu0
        %s688 = sld [smem:[#allocation3]]
        %s689 = smul.f32 %s688, %s688
        %v690 = vstv %s689
        %v691 = vrcp.pop %v690
        %v692 = vmul.f32 %v690, %v691
        %v693 = vsub.f32 1.0, %v692
        %v694 = vmul.f32 %v691, %v693
        %v695 = vadd.f32 %v691, %v694
        %vm696 = vweird.f32 %v690
        %vm697 = vweird.f32 %v691
        %vm698 = vmor %vm696, %vm697
        %v699 = vsel %vm698, %v691, %v695
        %v700 = vand.u32 2147483647, %v690
        %vm701 = vcmp.eq.f32.partialorder %v700, 8.507059e+37
        %v702 = vand.u32 %v690, 2147483648
        %v703 = vor.u32 1.1754944e-38, %v702
        %v704 = vsel %vm701, %v703, %v699
        %s705 = vtos %v704
        %v706 = vld [vmem:[%s505] sm:$0xff]
        %v707 = vld [vmem:[%s505 + $0x8] sm:$0xff]
        %v708 = vstv %s705
        %v709 = vmul.f32 %v706, %v708
        %v710 = vmul.f32 %v707, %v708
        %v711 = vsub.f32 %v709, 1.732868
        %v712 = vsub.f32 %v710, 1.732868
        %v713 = vmul.f32 %v711, 1.442695
        %v714 = vpow.pop %v713
        %v715 = vmul.f32 %v712, 1.442695
        %v716 = vpow.pop %v715
        %v717 = vmul.f32 %v614, %v714
        %v718 = vmul.f32 %v640, %v716
        %v719 = vand.u32 2147483647, %v717
        %v720 = vand.u32 2147483647, %v718
        %v721 = vmul.f32 %v663, %v714
        %v722 = vmul.f32 %v686, %v716
        %v723 = vand.u32 2147483647, %v721
        %v724 = vand.u32 2147483647, %v722
        %vm725 = vcmask 64512
        %v726 = vsel %vm725, %v719, -inf
        %727 = vmax.xlane.f32.xlu0 %v726
        %v728 = vpop.xlane.xlu0 %727
        %v729 = vsel %vm725, %v720, -inf
        %730 = vmax.xlane.f32.xlu0 %v729
        %v731 = vpop.xlane.xlu0 %730
        %v732 = vsub.f32 %v719, %v728
        %v733 = vsub.f32 %v720, %v731
        %v734 = vmul.f32 %v732, 1.442695
        %v735 = vpow.pop %v734
        %v736 = vmul.f32 %v733, 1.442695
        %v737 = vpow.pop %v736
        %v738 = vsel %vm725, %v735, 0.0
        %739 = vadd.xlane.f32.xlu0 %v738
        %v740 = vpop.xlane.xlu0 %739
        %v741 = vsel %vm725, %v737, 0.0
        %742 = vadd.xlane.f32.xlu0 %v741
        %v743 = vpop.xlane.xlu0 %742
        %v744 = vrcp.pop %v740
        %v745 = vmul.f32 %v740, %v744
        %v746 = vsub.f32 1.0, %v745
        %v747 = vmul.f32 %v744, %v746
        %v748 = vadd.f32 %v744, %v747
        %vm749 = vweird.f32 %v740
        %vm750 = vweird.f32 %v744
        %vm751 = vmor %vm749, %vm750
        %v752 = vsel %vm751, %v744, %v748
        %v753 = vand.u32 2147483647, %v740
        %vm754 = vcmp.eq.f32.partialorder %v753, 8.507059e+37
        %v755 = vand.u32 %v740, 2147483648
        %v756 = vor.u32 1.1754944e-38, %v755
        %v757 = vsel %vm754, %v756, %v752
        %v758 = vrcp.pop %v743
        %v759 = vmul.f32 %v743, %v758
        %v760 = vsub.f32 1.0, %v759
        %v761 = vmul.f32 %v758, %v760
        %v762 = vadd.f32 %v758, %v761
        %vm763 = vweird.f32 %v743
        %vm764 = vweird.f32 %v758
        %vm765 = vmor %vm763, %vm764
        %v766 = vsel %vm765, %v758, %v762
        %v767 = vand.u32 2147483647, %v743
        %vm768 = vcmp.eq.f32.partialorder %v767, 8.507059e+37
        %v769 = vand.u32 %v743, 2147483648
        %v770 = vor.u32 1.1754944e-38, %v769
        %v771 = vsel %vm768, %v770, %v766
        %v772 = vmul.f32 %v735, %v757
        %v773 = vmul.f32 %v737, %v771
        %v774 = vsel %vm725, %v723, -inf
        %775 = vmax.xlane.f32.xlu0 %v774
        %v776 = vpop.xlane.xlu0 %775
        %v777 = vsel %vm725, %v724, -inf
        %778 = vmax.xlane.f32.xlu0 %v777
        %v779 = vpop.xlane.xlu0 %778
        %v780 = vsub.f32 %v723, %v776
        %v781 = vsub.f32 %v724, %v779
        %v782 = vmul.f32 %v780, 1.442695
        %v783 = vpow.pop %v782
        %v784 = vmul.f32 %v781, 1.442695
        %v785 = vpow.pop %v784
        %v786 = vsel %vm725, %v783, 0.0
        %787 = vadd.xlane.f32.xlu0 %v786
        %v788 = vpop.xlane.xlu0 %787
        %v789 = vsel %vm725, %v785, 0.0
        %790 = vadd.xlane.f32.xlu0 %v789
        %v791 = vpop.xlane.xlu0 %790
        %v792 = vrcp.pop %v788
        %v793 = vmul.f32 %v788, %v792
        %v794 = vsub.f32 1.0, %v793
        %v795 = vmul.f32 %v792, %v794
        %v796 = vadd.f32 %v792, %v795
        %vm797 = vweird.f32 %v788
        %vm798 = vweird.f32 %v792
        %vm799 = vmor %vm797, %vm798
        %v800 = vsel %vm799, %v792, %v796
        %v801 = vand.u32 2147483647, %v788
        %vm802 = vcmp.eq.f32.partialorder %v801, 8.507059e+37
        %v803 = vand.u32 %v788, 2147483648
        %v804 = vor.u32 1.1754944e-38, %v803
        %v805 = vsel %vm802, %v804, %v800
        %v806 = vrcp.pop %v791
        %v807 = vmul.f32 %v791, %v806
        %v808 = vsub.f32 1.0, %v807
        %v809 = vmul.f32 %v806, %v808
        %v810 = vadd.f32 %v806, %v809
        %vm811 = vweird.f32 %v791
        %vm812 = vweird.f32 %v806
        %vm813 = vmor %vm811, %vm812
        %v814 = vsel %vm813, %v806, %v810
        %v815 = vand.u32 2147483647, %v791
        %vm816 = vcmp.eq.f32.partialorder %v815, 8.507059e+37
        %v817 = vand.u32 %v791, 2147483648
        %v818 = vor.u32 1.1754944e-38, %v817
        %v819 = vsel %vm816, %v818, %v814
        %v820 = vmul.f32 %v783, %v805
        %v821 = vmul.f32 %v785, %v819
        %v822 = vld [vmem:[%s485] sm:$0xff]
        %v823 = vld [vmem:[%s485 + $0x8] sm:$0xff]
        %v824 = vld [vmem:[%s495] sm:$0xff]
        %v825 = vld [vmem:[%s495 + $0x8] sm:$0xff]
        %v827 = vsel %vm725, %v772, 0
        %829 = vmatpush.msra.mxu0 0.0
        %830 = vmatpush.msra.mxu0 0.0
        %831 = vmatpush.msra.mxu0 0.0
        %832 = vmatpush.msra.mxu0 0.0
        %833 = vmatpush.msra.mxu0 0.0
        %834 = vmatpush.msra.mxu0 0.0
        %835 = vmatpush.msra.mxu0 0.0
        %836 = vmatpush.msra.mxu0 0.0
        %837 = vmatpush.msra.mxu0 0.0
        %838 = vmatpush.msra.mxu0 0.0
        %839 = vmatpush.msra.mxu0 0.0
        %840 = vmatpush.msra.mxu0 0.0
        %841 = vmatpush.msra.mxu0 0.0
        %842 = vmatpush.msra.mxu0 0.0
        %843 = vmatpush.msra.mxu0 0.0
        %844 = vmatpush.msra.mxu0 %v822
        %845 = vmatmul.f32.gmra.mxu0 %v827
        %v846 = vpop.f32.mrf.mxu0
        %v847 = vadd.f32 0.0, %v846
        %848 = vdwg.mxu0
        %v850 = vsel %vm725, %v773, 0
        %852 = vmatpush.msra.mxu0 0.0
        %853 = vmatpush.msra.mxu0 0.0
        %854 = vmatpush.msra.mxu0 0.0
        %855 = vmatpush.msra.mxu0 0.0
        %856 = vmatpush.msra.mxu0 0.0
        %857 = vmatpush.msra.mxu0 0.0
        %858 = vmatpush.msra.mxu0 0.0
        %859 = vmatpush.msra.mxu0 0.0
        %860 = vmatpush.msra.mxu0 0.0
        %861 = vmatpush.msra.mxu0 0.0
        %862 = vmatpush.msra.mxu0 0.0
        %863 = vmatpush.msra.mxu0 0.0
        %864 = vmatpush.msra.mxu0 0.0
        %865 = vmatpush.msra.mxu0 0.0
        %866 = vmatpush.msra.mxu0 0.0
        %867 = vmatpush.msra.mxu0 %v823
        %868 = vmatmul.f32.gmra.mxu0 %v850
        %v869 = vpop.f32.mrf.mxu0
        %v870 = vadd.f32 0.0, %v869
        %871 = vdwg.mxu0
        %v873 = vsel %vm725, %v820, 0
        %875 = vmatpush.msra.mxu0 0.0
        %876 = vmatpush.msra.mxu0 0.0
        %877 = vmatpush.msra.mxu0 0.0
        %878 = vmatpush.msra.mxu0 0.0
        %879 = vmatpush.msra.mxu0 0.0
        %880 = vmatpush.msra.mxu0 0.0
        %881 = vmatpush.msra.mxu0 0.0
        %882 = vmatpush.msra.mxu0 0.0
        %883 = vmatpush.msra.mxu0 0.0
        %884 = vmatpush.msra.mxu0 0.0
        %885 = vmatpush.msra.mxu0 0.0
        %886 = vmatpush.msra.mxu0 0.0
        %887 = vmatpush.msra.mxu0 0.0
        %888 = vmatpush.msra.mxu0 0.0
        %889 = vmatpush.msra.mxu0 0.0
        %890 = vmatpush.msra.mxu0 %v824
        %891 = vmatmul.f32.gmra.mxu0 %v873
        %v892 = vpop.f32.mrf.mxu0
        %v893 = vadd.f32 0.0, %v892
        %894 = vdwg.mxu0
        %v896 = vsel %vm725, %v821, 0
        %898 = vmatpush.msra.mxu0 0.0
        %899 = vmatpush.msra.mxu0 0.0
        %900 = vmatpush.msra.mxu0 0.0
        %901 = vmatpush.msra.mxu0 0.0
        %902 = vmatpush.msra.mxu0 0.0
        %903 = vmatpush.msra.mxu0 0.0
        %904 = vmatpush.msra.mxu0 0.0
        %905 = vmatpush.msra.mxu0 0.0
        %906 = vmatpush.msra.mxu0 0.0
        %907 = vmatpush.msra.mxu0 0.0
        %908 = vmatpush.msra.mxu0 0.0
        %909 = vmatpush.msra.mxu0 0.0
        %910 = vmatpush.msra.mxu0 0.0
        %911 = vmatpush.msra.mxu0 0.0
        %912 = vmatpush.msra.mxu0 0.0
        %913 = vmatpush.msra.mxu0 %v825
        %914 = vmatmul.f32.gmra.mxu0 %v896
        %v915 = vpop.f32.mrf.mxu0
        %v916 = vadd.f32 0.0, %v915
        %917 = vdwg.mxu0
        %920 = vrot.lane.b32.xlu0 %v893, 32
        %v921 = vpop.permute.xlu0 %920
        %922 = vrot.lane.b32.xlu0 %v916, 32
        %v923 = vpop.permute.xlu0 %922
        %vm926 = vcmask 261120
        %v927 = vsel %vm926, %v847, %v921
        %v928 = vsel %vm926, %v870, %v923
        %929 = vst.msk [vmem:[%s559] sm:$0xff] %vm589, %v927
        %930 = vst.msk [vmem:[%s559 + $0x8] sm:$0xff] %vm589, %v928
        %931 = vst.msk [vmem:[%s566] sm:$0xff] %vm725, %v772
        %932 = vst.msk [vmem:[%s566 + $0x8] sm:$0xff] %vm725, %v773
        %933 = vst.msk [vmem:[%s573] sm:$0xff] %vm725, %v820
        %934 = vst.msk [vmem:[%s573 + $0x8] sm:$0xff] %vm725, %v821
        %s935 = sand.u32 %s222, 1
        %s936 = scalar_lea.sflag [#allocation6], %s935
        %s937 = sand.u32 %s222, 1
        %s938 = smul.addr %s937, 16
        %s939 = scalar_lea.vmem [#allocation15], %s938
        %s940 = sand.u32 %s40, 1
        %s941 = scalar_lea.sflag [#allocation17], %s940
        %s942 = sand.u32 %s250, 1
        %s943 = smul.addr %s942, 16
        %s944 = scalar_lea.vmem [#allocation16], %s943
        %s945 = sand.u32 %s40, 1
        %s946 = scalar_lea.sflag [#allocation17], %s945
        %s947 = sand.u32 %s278, 1
        %s948 = smul.addr %s947, 16
        %s949 = scalar_lea.vmem [#allocation18], %s948
        // Predicated region
        $region69: #{tpu_custom_call.1} parent=43 // pred_check
          %p950 = pneg %p232
        $region70: #{tpu_custom_call.1} parent=43 // pred_check_branch
          %952 = sbr.rel (%p950) target = $region72
        $region71: #{tpu_custom_call.1} parent=43 // pred_region
          %s953 = smul.u32 2, %s44
          %955 = vsyncadd %s936, 0
          %s956 = sadd.s32 %s45, %s953
          %s957 = smul.addr %s956, 8
          %s958 = scalar_lea.hbm %s7, %s957
          %s959 = sshll.u32 %s939, 4
          %s960 = int_to_ptr.vmem [resolvable:$true] %s959
          %s961 = sshll.u32 %s958, 4
          %s962 = int_to_ptr.hbm [resolvable:$true] %s961
          %967 = dma.vmem_to_hbm [thread:$0]  %s960, 256, %s962, %s936, 128, 128, 8
        $region72: #{tpu_custom_call.1} parent=43 // pred_fallthru
          _
        // Predicated region
        $region73: #{tpu_custom_call.1} parent=43 // pred_check
          %p968 = pneg %p260
        $region74: #{tpu_custom_call.1} parent=43 // pred_check_branch
          %970 = sbr.rel (%p968) target = $region76
        $region75: #{tpu_custom_call.1} parent=43 // pred_region
          %s971 = smul.u32 2, %s44
          %973 = vsyncadd %s941, 0
          %s974 = sadd.s32 %s45, %s971
          %s975 = smul.addr %s974, 8
          %s976 = scalar_lea.hbm %s8, %s975
          %s977 = sshll.u32 %s944, 4
          %s978 = int_to_ptr.vmem [resolvable:$true] %s977
          %s979 = sshll.u32 %s976, 4
          %s980 = int_to_ptr.hbm [resolvable:$true] %s979
          %985 = dma.vmem_to_hbm [thread:$0]  %s978, 256, %s980, %s941, 128, 128, 8
        $region76: #{tpu_custom_call.1} parent=43 // pred_fallthru
          _
        // Predicated region
        $region77: #{tpu_custom_call.1} parent=43 // pred_check
          %p986 = pneg %p288
        $region78: #{tpu_custom_call.1} parent=43 // pred_check_branch
          %988 = sbr.rel (%p986) target = $region80
        $region79: #{tpu_custom_call.1} parent=43 // pred_region
          %s989 = smul.u32 2, %s44
          %991 = vsyncadd %s946, 0
          %s992 = sadd.s32 %s45, %s989
          %s993 = smul.addr %s992, 8
          %s994 = scalar_lea.hbm %s9, %s993
          %s995 = sshll.u32 %s949, 4
          %s996 = int_to_ptr.vmem [resolvable:$true] %s995
          %s997 = sshll.u32 %s994, 4
          %s998 = int_to_ptr.hbm [resolvable:$true] %s997
          %1003 = dma.vmem_to_hbm [thread:$0]  %s996, 256, %s998, %s946, 128, 128, 8
        $region80: #{tpu_custom_call.1} parent=43 // pred_fallthru
          _
      $region44: #{tpu_custom_call.1} parent=5 // pred_fallthru
        _
      %p1004 = scmp.le.s32.totalorder 2, %s35
      // Predicated region
      $region81: #{tpu_custom_call.1} parent=5 // pred_check
        %p1005 = pneg %p1004
      $region82: #{tpu_custom_call.1} parent=5 // pred_check_branch
        %1007 = sbr.rel (%p1005) target = $region84
      $region83: #{tpu_custom_call.1} parent=5 // pred_region
        %s1008 = ssub.s32 %s35, 2
        // Predicated region
        $region85: #{tpu_custom_call.1} parent=83 // pred_check
          %p1009 = pneg %p238
        $region86: #{tpu_custom_call.1} parent=83 // pred_check_branch
          %1011 = sbr.rel (%p1009) target = $region88
        $region87: #{tpu_custom_call.1} parent=83 // pred_region
          %s1012 = sand.u32 %s223, 1
          %s1013 = scalar_lea.sflag [#allocation6], %s1012
          %s1014 = sand.u32 %s223, 1
          %s1015 = smul.addr %s1014, 16
          %s1016 = scalar_lea.vmem [#allocation15], %s1015
          %1018 = dma.done %s1013, 256
        $region88: #{tpu_custom_call.1} parent=83 // pred_fallthru
          _
        // Predicated region
        $region89: #{tpu_custom_call.1} parent=83 // pred_check
          %p1019 = pneg %p266
        $region90: #{tpu_custom_call.1} parent=83 // pred_check_branch
          %1021 = sbr.rel (%p1019) target = $region92
        $region91: #{tpu_custom_call.1} parent=83 // pred_region
          %s1022 = sand.u32 %s41, 1
          %s1023 = scalar_lea.sflag [#allocation17], %s1022
          %s1024 = sand.u32 %s251, 1
          %s1025 = smul.addr %s1024, 16
          %s1026 = scalar_lea.vmem [#allocation16], %s1025
          %1028 = dma.done %s1023, 256
        $region92: #{tpu_custom_call.1} parent=83 // pred_fallthru
          _
        // Predicated region
        $region93: #{tpu_custom_call.1} parent=83 // pred_check
          %p1029 = pneg %p294
        $region94: #{tpu_custom_call.1} parent=83 // pred_check_branch
          %1031 = sbr.rel (%p1029) target = $region96
        $region95: #{tpu_custom_call.1} parent=83 // pred_region
          %s1032 = sand.u32 %s41, 1
          %s1033 = scalar_lea.sflag [#allocation17], %s1032
          %s1034 = sand.u32 %s279, 1
          %s1035 = smul.addr %s1034, 16
          %s1036 = scalar_lea.vmem [#allocation18], %s1035
          %1038 = dma.done %s1033, 256
        $region96: #{tpu_custom_call.1} parent=83 // pred_fallthru
          _
      $region84: #{tpu_custom_call.1} parent=5 // pred_fallthru
        _
    $region6: #{tpu_custom_call.1} parent=1 // loop_footer
      %s39 = sadd.s32 1, %s35
    $region7: #{tpu_custom_call.1} parent=1 // loop_footer_branch
      %34 = sbr.rel target = $region3
    $region8: #{tpu_custom_call.1} parent=1 // loop_exit
      _
    %1039 = vsyncpa [#allocation5], 1
    %s1040 = scalar_lea.sflag [#allocation5], 1
    %1041 = vsyncpa %s1040, 1
    %1042 = vsyncpa [#allocation8], 1
    %s1043 = scalar_lea.sflag [#allocation8], 1
    %1044 = vsyncpa %s1043, 1
    %1045 = vsyncpa [#allocation11], 1
    %s1046 = scalar_lea.sflag [#allocation11], 1
    %1047 = vsyncpa %s1046, 1
    %1048 = vsyncpa [#allocation14], 1
    %s1049 = scalar_lea.sflag [#allocation14], 1
    %1050 = vsyncpa %s1049, 1
    %1051 = vsyncpa [#allocation6], 1
    %s1052 = scalar_lea.sflag [#allocation6], 1
    %1053 = vsyncpa %s1052, 1
    %1054 = vsyncpa [#allocation17], 1
    %s1055 = scalar_lea.sflag [#allocation17], 1
    %1056 = vsyncpa %s1055, 1

</llo_original>
